<compile_context>
chip_gen: v5e
topology: v5e:2x2
jax: 0.10.0
libtpu: 0.0.40
codegen_flags: <defaults>
</compile_context>

<pallas_src>
import jax
import jax.numpy as jnp
from jax.experimental import pallas as pl
from jax.experimental.pallas import tpu as pltpu

HIDDEN = 512
OUT = 784            # 28 * 28 — equals the full output feature dim


def _round_up(x, m):
    return ((x + m - 1) // m) * m


def decoder_kernel(z_ref, w1_ref, b1_ref, w2_ref, b2_ref, out_ref, h_ref):
    # Layer 1: (tb, L) @ (L, 512) + b1, ReLU.  bf16 MXU inputs, f32 accumulate.
    h = jnp.dot(z_ref[...].astype(jnp.bfloat16), w1_ref[...],
                preferred_element_type=jnp.float32)
    # bf16 hidden scratch: halves the VMEM round-trip for h and feeds layer 2
    # without a re-cast.
    h_ref[...] = jnp.maximum(h + b1_ref[...], 0.0).astype(jnp.bfloat16)
    # Layer 2: (tb, 512) @ (512, 784) + b2, sigmoid.
    o = jnp.dot(h_ref[...], w2_ref[...], preferred_element_type=jnp.float32)
    o = o + b2_ref[...]
    # sigmoid via EUP exp + approx reciprocal (avoids a full-precision VPU
    # divide; matters most on v5e's 4 f32 VALUs, neutral elsewhere).
    out_ref[...] = pl.reciprocal(1.0 + jnp.exp(-o), approx=True)


def _resident_spec(shape):
    """VMEM-resident operand: constant index_map, single-buffered if supported."""
    try:
        return pl.BlockSpec(shape, lambda i: (0, 0), pipeline_mode=pl.Buffered(1))
    except (TypeError, AttributeError):
        # Older JAX without pipeline_mode/Buffered: fall back to default buffering.
        return pl.BlockSpec(shape, lambda i: (0, 0))


def decoder_forward(z, w1, b1, w2, b2, *, tile_b=2048):
    """z: (B, latent_dims) f32.  w1/w2: bf16 (in, out).  b1/b2: f32 (1, out).

    Returns (B, 1, 28, 28) float32, matching the PyTorch Decoder.forward.
    """
    B, L = z.shape

    # Balanced batch tiles: never pad more than 7 rows per tile.  Cap tb at 2048
    # (keeps the derived VMEM budget safe on v7x's 64 MiB per-TC VMEM), and use
    # at least 2 grid steps when B permits so v7x's two TensorCores both get work.
    tile_b = min(tile_b, 2048)
    n_tiles = -(-B // tile_b)
    if n_tiles == 1 and B >= 16:
        n_tiles = 2
    tb = _round_up(-(-B // n_tiles), 8)
    b_pad = n_tiles * tb
    if b_pad != B:
        z = jnp.pad(z, ((0, b_pad - B), (0, 0)))

    grid = (n_tiles,)

    flops = 2 * b_pad * (L * HIDDEN + HIDDEN * OUT)
    bytes_accessed = (
        b_pad * L * 4                      # z in (f32)
        + b_pad * OUT * 4                  # out (f32)
        + (w1.size + w2.size) * 2          # bf16 weights
        + (b1.size + b2.size) * 4          # f32 biases
    )

    # VMEM budget derived from tb: double-buffered z + out tiles, bf16 h scratch,
    # single-buffered resident weights/biases, plus headroom for compiler scratch.
    vmem_needed = (
        2 * tb * L * 4                     # z tiles (double-buffered)
        + 2 * tb * OUT * 4                 # out tiles (double-buffered)
        + tb * HIDDEN * 2                  # bf16 hidden scratch
        + (w1.size + w2.size) * 2          # resident bf16 weights
        + (b1.size + b2.size) * 4          # resident f32 biases
    )
    vmem_limit = max(16 << 20, min(int(vmem_needed * 1.25) + (4 << 20), 48 << 20))

    flat = pl.pallas_call(
        decoder_kernel,
        out_shape=jax.ShapeDtypeStruct((b_pad, OUT), jnp.float32),
        grid_spec=pltpu.PrefetchScalarGridSpec(
            num_scalar_prefetch=0,
            grid=grid,
            in_specs=[
                pl.BlockSpec((tb, L), lambda i: (i, 0)),      # z tile
                _resident_spec((L, HIDDEN)),                  # w1 resident
                _resident_spec((1, HIDDEN)),                  # b1 resident
                _resident_spec((HIDDEN, OUT)),                # w2 resident
                _resident_spec((1, OUT)),                     # b2 resident
            ],
            out_specs=pl.BlockSpec((tb, OUT), lambda i: (i, 0)),
            scratch_shapes=[pltpu.VMEM((tb, HIDDEN), jnp.bfloat16)],
        ),
        compiler_params=pltpu.CompilerParams(
            dimension_semantics=("parallel",),   # batch tiles shard across TCs on v7x
            vmem_limit_bytes=vmem_limit,
        ),
        cost_estimate=pl.CostEstimate(
            flops=flops,
            transcendentals=b_pad * OUT,         # exp per output element
            bytes_accessed=bytes_accessed,
        ),
    )(z, w1, b1, w2, b2)

    if b_pad != B:
        flat = flat[:B]
    # Matches torch's reshape((-1, 1, 28, 28)); free bitcast, no feature de-pad.
    return flat.reshape((-1, 1, 28, 28))


def init_params(key, latent_dims):
    """Deterministic init mirroring nn.Linear shapes (pre-transposed, no padding).

    Weights are stored bf16 (MXU-native, halves the dominant HBM weight
    traffic); biases stay f32.
    """
    k1, k2, k3, k4 = jax.random.split(key, 4)
    # nn.Linear(latent_dims, 512): weight (512, latent_dims) -> stored (latent_dims, 512)
    bound1 = 1.0 / jnp.sqrt(latent_dims)
    w1 = jax.random.uniform(k1, (latent_dims, HIDDEN), jnp.float32, -bound1, bound1)
    b1 = jax.random.uniform(k2, (1, HIDDEN), jnp.float32, -bound1, bound1)
    # nn.Linear(512, 784): weight (784, 512) -> stored (512, 784)
    bound2 = 1.0 / jnp.sqrt(float(HIDDEN))
    w2 = jax.random.uniform(k3, (HIDDEN, OUT), jnp.float32, -bound2, bound2)
    b2 = jax.random.uniform(k4, (1, OUT), jnp.float32, -bound2, bound2)
    return w1.astype(jnp.bfloat16), b1, w2.astype(jnp.bfloat16), b2


if __name__ == "__main__":
    latent_dims = 32
    batch = 8

    key = jax.random.PRNGKey(0)
    kz, kp = jax.random.split(key)
    z = jax.random.normal(kz, (batch, latent_dims), dtype=jnp.float32)
    w1, b1, w2, b2 = init_params(kp, latent_dims)

    out = decoder_forward(z, w1, b1, w2, b2)
    out = jax.block_until_ready(out)

    # Reference in plain JAX (same math as the PyTorch forward), f32 weights.
    # bf16 weights / bf16 MXU inputs => relaxed tolerance vs the f32 reference.
    w1f = w1.astype(jnp.float32)
    w2f = w2.astype(jnp.float32)
    h_ref = jnp.maximum(z @ w1f + b1, 0.0)
    o_ref = jax.nn.sigmoid(h_ref @ w2f + b2).reshape((-1, 1, 28, 28))

    assert out.shape == (batch, 1, 28, 28), out.shape
    max_err = float(jnp.max(jnp.abs(out - o_ref)))
    assert max_err < 2e-2, max_err

    print("KERNEL_OK")
</pallas_src>

<mosaic_0001>
module attributes {stable_mosaic.version = 11 : i64} {
  func.func @decoder_kernel(%arg0: i32, %arg1: memref<8x32xf32, #tpu.memory_space<vmem>>, %arg2: memref<32x512xbf16, #tpu.memory_space<vmem>>, %arg3: memref<1x512xf32, #tpu.memory_space<vmem>>, %arg4: memref<512x784xbf16, #tpu.memory_space<vmem>>, %arg5: memref<1x784xf32, #tpu.memory_space<vmem>>, %arg6: memref<8x784xf32, #tpu.memory_space<vmem>>, %arg7: memref<8x512xbf16, #tpu.memory_space<vmem>>) attributes {dimension_semantics = [#tpu.dimension_semantics<parallel>], iteration_bounds = array<i64: 1>, scalar_prefetch = 0 : i64, scratch_operands = 1 : i64, tpu.core_type = #tpu.core_type<tc>, window_params = [{transform_indices = @transform_0, window_bounds = array<i64: 8, 32>}, {pipeline_mode = #tpu.pipeline_mode<synchronous>, transform_indices = @transform_1, window_bounds = array<i64: 32, 512>}, {pipeline_mode = #tpu.pipeline_mode<synchronous>, transform_indices = @transform_2, window_bounds = array<i64: 1, 512>}, {pipeline_mode = #tpu.pipeline_mode<synchronous>, transform_indices = @transform_3, window_bounds = array<i64: 512, 784>}, {pipeline_mode = #tpu.pipeline_mode<synchronous>, transform_indices = @transform_4, window_bounds = array<i64: 1, 784>}, {transform_indices = @transform_5, window_bounds = array<i64: 8, 784>}]} {
    %c0 = arith.constant 0 : index
    %c0_0 = arith.constant 0 : index
    %0 = vector.load %arg1[%c0, %c0_0] : memref<8x32xf32, #tpu.memory_space<vmem>>, vector<8x32xf32>
    %1 = arith.truncf %0 : vector<8x32xf32> to vector<8x32xbf16>
    %c0_1 = arith.constant 0 : index
    %c0_2 = arith.constant 0 : index
    %2 = vector.load %arg2[%c0_1, %c0_2] : memref<32x512xbf16, #tpu.memory_space<vmem>>, vector<32x512xbf16>
    %cst = arith.constant dense<0.000000e+00> : vector<8x512xf32>
    %3 = tpu.matmul %1, %2, %cst {dimension_numbers = #tpu.dot_dimension_numbers<[1], [0], [0], [1], [0, 0, 1, 1], [], []>} : vector<8x32xbf16>, vector<32x512xbf16>, vector<8x512xf32> -> vector<8x512xf32>
    %c0_3 = arith.constant 0 : index
    %c0_4 = arith.constant 0 : index
    %4 = vector.load %arg3[%c0_3, %c0_4] : memref<1x512xf32, #tpu.memory_space<vmem>>, vector<1x512xf32>
    %5 = vector.broadcast %4 : vector<1x512xf32> to vector<8x512xf32>
    %6 = arith.addf %3, %5 : vector<8x512xf32>
    %cst_5 = arith.constant 0.000000e+00 : f32
    %7 = vector.broadcast %cst_5 : f32 to vector<8x512xf32>
    %8 = arith.maximumf %6, %7 : vector<8x512xf32>
    %9 = arith.truncf %8 : vector<8x512xf32> to vector<8x512xbf16>
    %c0_6 = arith.constant 0 : index
    %c0_7 = arith.constant 0 : index
    %10 = vector.load %arg7[%c0_6, %c0_7] : memref<8x512xbf16, #tpu.memory_space<vmem>>, vector<8x512xbf16>
    tpu.vector_store %arg7[%c0_6, %c0_7], %9 {strides = array<i32>} : memref<8x512xbf16, #tpu.memory_space<vmem>>, vector<8x512xbf16>,
    %c0_8 = arith.constant 0 : index
    %c0_9 = arith.constant 0 : index
    %11 = vector.load %arg7[%c0_8, %c0_9] : memref<8x512xbf16, #tpu.memory_space<vmem>>, vector<8x512xbf16>
    %c0_10 = arith.constant 0 : index
    %c0_11 = arith.constant 0 : index
    %12 = vector.load %arg4[%c0_10, %c0_11] : memref<512x784xbf16, #tpu.memory_space<vmem>>, vector<512x784xbf16>
    %cst_12 = arith.constant dense<0.000000e+00> : vector<8x784xf32>
    %13 = tpu.matmul %11, %12, %cst_12 {dimension_numbers = #tpu.dot_dimension_numbers<[1], [0], [0], [1], [0, 0, 1, 1], [], []>} : vector<8x512xbf16>, vector<512x784xbf16>, vector<8x784xf32> -> vector<8x784xf32>
    %c0_13 = arith.constant 0 : index
    %c0_14 = arith.constant 0 : index
    %14 = vector.load %arg5[%c0_13, %c0_14] : memref<1x784xf32, #tpu.memory_space<vmem>>, vector<1x784xf32>
    %15 = vector.broadcast %14 : vector<1x784xf32> to vector<8x784xf32>
    %16 = arith.addf %13, %15 : vector<8x784xf32>
    %cst_15 = arith.constant 0.000000e+00 : f32
    %17 = vector.broadcast %cst_15 : f32 to vector<8x784xf32>
    %18 = arith.subf %17, %16 : vector<8x784xf32>
    %19 = math.exp %18 : vector<8x784xf32>
    %cst_16 = arith.constant 1.000000e+00 : f32
    %20 = vector.broadcast %cst_16 : f32 to vector<8x784xf32>
    %21 = arith.addf %20, %19 : vector<8x784xf32>
    %22 = tpu.reciprocal %21 {approx = true} : vector<8x784xf32> -> vector<8x784xf32>
    %c0_17 = arith.constant 0 : index
    %c0_18 = arith.constant 0 : index
    %23 = vector.load %arg6[%c0_17, %c0_18] : memref<8x784xf32, #tpu.memory_space<vmem>>, vector<8x784xf32>
    tpu.vector_store %arg6[%c0_17, %c0_18], %22 {strides = array<i32>} : memref<8x784xf32, #tpu.memory_space<vmem>>, vector<8x784xf32>,
    return
  }
  func.func @transform_0(%arg0: i32) -> (i32, i32) {
    %c0_i32 = arith.constant 0 : i32
    %c0_i32_0 = arith.constant 0 : i32
    return %arg0, %c0_i32 : i32, i32
  }
  func.func @transform_1(%arg0: i32) -> (i32, i32) {
    %c0_i32 = arith.constant 0 : i32
    %c0_i32_0 = arith.constant 0 : i32
    %c0_i32_1 = arith.constant 0 : i32
    return %c0_i32, %c0_i32_0 : i32, i32
  }
  func.func @transform_2(%arg0: i32) -> (i32, i32) {
    %c0_i32 = arith.constant 0 : i32
    %c0_i32_0 = arith.constant 0 : i32
    %c0_i32_1 = arith.constant 0 : i32
    return %c0_i32, %c0_i32_0 : i32, i32
  }
  func.func @transform_3(%arg0: i32) -> (i32, i32) {
    %c0_i32 = arith.constant 0 : i32
    %c0_i32_0 = arith.constant 0 : i32
    %c0_i32_1 = arith.constant 0 : i32
    return %c0_i32, %c0_i32_0 : i32, i32
  }
  func.func @transform_4(%arg0: i32) -> (i32, i32) {
    %c0_i32 = arith.constant 0 : i32
    %c0_i32_0 = arith.constant 0 : i32
    %c0_i32_1 = arith.constant 0 : i32
    return %c0_i32, %c0_i32_0 : i32, i32
  }
  func.func @transform_5(%arg0: i32) -> (i32, i32) {
    %c0_i32 = arith.constant 0 : i32
    %c0_i32_0 = arith.constant 0 : i32
    return %arg0, %c0_i32 : i32, i32
  }
}

</mosaic_0001>

<llo_original>
// kernel: tpu_custom_call.1
$region0: #{tpu_custom_call.1}
  #allocation0 [shape = 'u32[]', space=smem, size = 0x4, offset = 0x4, fixed_abs, tag = 'smem constant byte address 0x4 - core index']
  #allocation1 [shape = 'u32[72,128]{1,0:T(1,128)}', space=vmem, size = 0x9000, scoped, tag = 'internal scratch']
  #allocation2 [shape = 'bf16[8,512]{1,0:T(8,128)(2,1)}', space=vmem, size = 0x2000, scoped, tag = 'scratch operand']
  %s0 = inlined_call_operand.vmem [shape: f32[8,32], index: 0, kind: input, shape index: {}]
  %s1 = inlined_call_operand.vmem [shape: bf16[32,512], index: 1, kind: input, shape index: {}]
  %s2 = inlined_call_operand.vmem [shape: f32[1,512], index: 2, kind: input, shape index: {}]
  %s3 = inlined_call_operand.vmem [shape: bf16[512,784], index: 3, kind: input, shape index: {}]
  %s4 = inlined_call_operand.vmem [shape: f32[1,784], index: 4, kind: input, shape index: {}]
  %s5 = inlined_call_operand.hbm [shape: f32[8,784], index: 5, kind: output, shape index: {}]
  %s6 = sld [smem:[#allocation0]]
  $region30: #{tpu_custom_call.1} parent=0
    _
  %s8 = ssub.s32 1, %s6
  %s9 = scalar_select 0, %s8, %s6
  $region1: #{tpu_custom_call.1} parent=0
    #allocation3 [shape = 'u8[28672]{0}', space=vmem, size = 0x7000, scoped, tag = 'output window, operand 0, single buffered']
    #allocation4 [shape = 's32[1]{0}', space=sflag, size = 0x4, scoped, tag = 'scoped memory for tpu_custom_call.1']
    %10 = vsyncpa [#allocation4], 0
    // Predicated region
    $region2: #{tpu_custom_call.1} parent=1 // pred_check
      _
    $region3: #{tpu_custom_call.1} parent=1 // pred_check_branch
      %12 = sbr.rel (0) target = $region5
    $region4: #{tpu_custom_call.1} parent=1 // pred_region
      _
    $region5: #{tpu_custom_call.1} parent=1 // pred_fallthru
      _
    // Predicated region
    $region6: #{tpu_custom_call.1} parent=1 // pred_check
      _
    $region7: #{tpu_custom_call.1} parent=1 // pred_check_branch
      %14 = sbr.rel (0) target = $region9
    $region8: #{tpu_custom_call.1} parent=1 // pred_region
      _
    $region9: #{tpu_custom_call.1} parent=1 // pred_fallthru
      _
    // Predicated region
    $region10: #{tpu_custom_call.1} parent=1 // pred_check
      _
    $region11: #{tpu_custom_call.1} parent=1 // pred_check_branch
      %16 = sbr.rel (0) target = $region13
    $region12: #{tpu_custom_call.1} parent=1 // pred_region
      _
    $region13: #{tpu_custom_call.1} parent=1 // pred_fallthru
      _
    // Predicated region
    $region14: #{tpu_custom_call.1} parent=1 // pred_check
      _
    $region15: #{tpu_custom_call.1} parent=1 // pred_check_branch
      %18 = sbr.rel (0) target = $region17
    $region16: #{tpu_custom_call.1} parent=1 // pred_region
      _
    $region17: #{tpu_custom_call.1} parent=1 // pred_fallthru
      _
    // Predicated region
    $region18: #{tpu_custom_call.1} parent=1 // pred_check
      _
    $region19: #{tpu_custom_call.1} parent=1 // pred_check_branch
      %20 = sbr.rel (0) target = $region21
    $region20: #{tpu_custom_call.1} parent=1 // pred_region
      _
    $region21: #{tpu_custom_call.1} parent=1 // pred_fallthru
      _
    %v22 = vld [vmem:[%s0] sm:$0xff]
    %v23 = vpack.c.bf16 %v22, %v22
    %v24 = vld [vmem:[%s1] sm:$0xff]
    %v25 = vld [vmem:[%s1 + $0x8] sm:$0xff]
    %v26 = vld [vmem:[%s1 + $0x10] sm:$0xff]
    %v27 = vld [vmem:[%s1 + $0x18] sm:$0xff]
    %v28 = vld [vmem:[%s1 + $0x20] sm:$0xff]
    %v29 = vld [vmem:[%s1 + $0x28] sm:$0xff]
    %v30 = vld [vmem:[%s1 + $0x30] sm:$0xff]
    %v31 = vld [vmem:[%s1 + $0x38] sm:$0xff]
    %v32 = vld [vmem:[%s2] sm:$0xf]
    %v34 = vperm.slane %v32, 0
    %v35 = vperm.slane %v32, 1
    %v36 = vperm.slane %v32, 2
    %v37 = vperm.slane %v32, 3
    %v50 = vunpack.c.l.b16 %v24
    %v51 = vunpack.c.h.b16 %v24
    %v52 = vunpack.c.l.b16 %v25
    %v53 = vunpack.c.h.b16 %v25
    %v54 = vunpack.c.l.b16 %v26
    %v55 = vunpack.c.h.b16 %v26
    %v56 = vunpack.c.l.b16 %v27
    %v57 = vunpack.c.h.b16 %v27
    %v58 = vunpack.c.l.b16 %v28
    %v59 = vunpack.c.h.b16 %v28
    %v60 = vunpack.c.l.b16 %v29
    %v61 = vunpack.c.h.b16 %v29
    %v62 = vunpack.c.l.b16 %v30
    %v63 = vunpack.c.h.b16 %v30
    %v64 = vunpack.c.l.b16 %v31
    %v65 = vunpack.c.h.b16 %v31
    %v66 = vpack.c.b16 %v54, %v50
    %v67 = vpack.c.b16 %v55, %v51
    %v68 = vpack.c.b16 %v56, %v52
    %v69 = vpack.c.b16 %v57, %v53
    %v70 = vpack.c.b16 %v62, %v58
    %v71 = vpack.c.b16 %v63, %v59
    %v72 = vpack.c.b16 %v64, %v60
    %v73 = vpack.c.b16 %v65, %v61
    %vm82 = vcmask 261120
    %v84 = vsel %vm82, %v23, 0
    %86 = vmatpush.bf16.msra.mxu0 0
    %87 = vmatpush.bf16.msra.mxu0 0
    %88 = vmatpush.bf16.msra.mxu0 0
    %89 = vmatpush.bf16.msra.mxu0 0
    %90 = vmatpush.bf16.msra.mxu0 0
    %91 = vmatpush.bf16.msra.mxu0 0
    %92 = vmatpush.bf16.msra.mxu0 %v70
    %93 = vmatpush.bf16.msra.mxu0 %v66
    %94 = vmatmul.bf16.gmra.mxu0 %v84
    %v95 = vpop.f32.mrf.mxu0
    %v96 = vadd.f32 %v34, %v95
    %v97 = vpop.f32.mrf.mxu0
    %98 = vdwg.mxu0
    %99 = vmatpush.bf16.msra.mxu0 0
    %100 = vmatpush.bf16.msra.mxu0 0
    %101 = vmatpush.bf16.msra.mxu0 0
    %102 = vmatpush.bf16.msra.mxu0 0
    %103 = vmatpush.bf16.msra.mxu0 0
    %104 = vmatpush.bf16.msra.mxu0 0
    %105 = vmatpush.bf16.msra.mxu0 %v71
    %106 = vmatpush.bf16.msra.mxu0 %v67
    %107 = vmatmul.bf16.gmra.mxu0 %v84
    %v108 = vpop.f32.mrf.mxu0
    %v109 = vadd.f32 %v35, %v108
    %v110 = vpop.f32.mrf.mxu0
    %111 = vdwg.mxu0
    %112 = vmatpush.bf16.msra.mxu0 0
    %113 = vmatpush.bf16.msra.mxu0 0
    %114 = vmatpush.bf16.msra.mxu0 0
    %115 = vmatpush.bf16.msra.mxu0 0
    %116 = vmatpush.bf16.msra.mxu0 0
    %117 = vmatpush.bf16.msra.mxu0 0
    %118 = vmatpush.bf16.msra.mxu0 %v72
    %119 = vmatpush.bf16.msra.mxu0 %v68
    %120 = vmatmul.bf16.gmra.mxu0 %v84
    %v121 = vpop.f32.mrf.mxu0
    %v122 = vadd.f32 %v36, %v121
    %v123 = vpop.f32.mrf.mxu0
    %124 = vdwg.mxu0
    %125 = vmatpush.bf16.msra.mxu0 0
    %126 = vmatpush.bf16.msra.mxu0 0
    %127 = vmatpush.bf16.msra.mxu0 0
    %128 = vmatpush.bf16.msra.mxu0 0
    %129 = vmatpush.bf16.msra.mxu0 0
    %130 = vmatpush.bf16.msra.mxu0 0
    %131 = vmatpush.bf16.msra.mxu0 %v73
    %132 = vmatpush.bf16.msra.mxu0 %v69
    %133 = vmatmul.bf16.gmra.mxu0 %v84
    %v134 = vpop.f32.mrf.mxu0
    %v135 = vadd.f32 %v37, %v134
    %v136 = vpop.f32.mrf.mxu0
    %137 = vdwg.mxu0
    %v138 = vmax.f32 %v96, 0.0
    %v139 = vmax.f32 %v109, 0.0
    %v140 = vmax.f32 %v122, 0.0
    %v141 = vmax.f32 %v135, 0.0
    %v142 = vpack.c.bf16 %v139, %v138
    %v143 = vpack.c.bf16 %v141, %v140
    %144 = vst [vmem:[#allocation2] sm:$0xff] %v142
    %145 = vst [vmem:[#allocation2 + $0x8] sm:$0xff] %v143
    %v146 = vld [vmem:[#allocation2] sm:$0xff]
    %v147 = vld [vmem:[#allocation2 + $0x8] sm:$0xff]
    %v148 = vld [vmem:[%s3] sm:$0xff]
    %v149 = vld [vmem:[%s3 + $0x8] sm:$0xff]
    %v150 = vld [vmem:[%s3 + $0x10] sm:$0xff]
    %v151 = vld [vmem:[%s3 + $0x18] sm:$0xf]
    %v152 = vld [vmem:[%s3 + $0x1c] sm:$0xff]
    %v153 = vld [vmem:[%s3 + $0x24] sm:$0xff]
    %v154 = vld [vmem:[%s3 + $0x2c] sm:$0xff]
    %v155 = vld [vmem:[%s3 + $0x34] sm:$0xf]
    %v156 = vld [vmem:[%s3 + $0x38] sm:$0xff]
    %v157 = vld [vmem:[%s3 + $0x40] sm:$0xff]
    %v158 = vld [vmem:[%s3 + $0x48] sm:$0xff]
    %v159 = vld [vmem:[%s3 + $0x50] sm:$0xf]
    %v160 = vld [vmem:[%s3 + $0x54] sm:$0xff]
    %v161 = vld [vmem:[%s3 + $0x5c] sm:$0xff]
    %v162 = vld [vmem:[%s3 + $0x64] sm:$0xff]
    %v163 = vld [vmem:[%s3 + $0x6c] sm:$0xf]
    %v164 = vld [vmem:[%s3 + $0x70] sm:$0xff]
    %v165 = vld [vmem:[%s3 + $0x78] sm:$0xff]
    %v166 = vld [vmem:[%s3 + $0x80] sm:$0xff]
    %v167 = vld [vmem:[%s3 + $0x88] sm:$0xf]
    %v168 = vld [vmem:[%s3 + $0x8c] sm:$0xff]
    %v169 = vld [vmem:[%s3 + $0x94] sm:$0xff]
    %v170 = vld [vmem:[%s3 + $0x9c] sm:$0xff]
    %v171 = vld [vmem:[%s3 + $0xa4] sm:$0xf]
    %v172 = vld [vmem:[%s3 + $0xa8] sm:$0xff]
    %v173 = vld [vmem:[%s3 + $0xb0] sm:$0xff]
    %v174 = vld [vmem:[%s3 + $0xb8] sm:$0xff]
    %v175 = vld [vmem:[%s3 + $0xc0] sm:$0xf]
    %v176 = vld [vmem:[%s3 + $0xc4] sm:$0xff]
    %v177 = vld [vmem:[%s3 + $0xcc] sm:$0xff]
    %v178 = vld [vmem:[%s3 + $0xd4] sm:$0xff]
    %v179 = vld [vmem:[%s3 + $0xdc] sm:$0xf]
    %v180 = vld [vmem:[%s3 + $0xe0] sm:$0xff]
    %v181 = vld [vmem:[%s3 + $0xe8] sm:$0xff]
    %v182 = vld [vmem:[%s3 + $0xf0] sm:$0xff]
    %v183 = vld [vmem:[%s3 + $0xf8] sm:$0xf]
    %v184 = vld [vmem:[%s3 + $0xfc] sm:$0xff]
    %v185 = vld [vmem:[%s3 + $0x104] sm:$0xff]
    %v186 = vld [vmem:[%s3 + $0x10c] sm:$0xff]
    %v187 = vld [vmem:[%s3 + $0x114] sm:$0xf]
    %v188 = vld [vmem:[%s3 + $0x118] sm:$0xff]
    %v189 = vld [vmem:[%s3 + $0x120] sm:$0xff]
    %v190 = vld [vmem:[%s3 + $0x128] sm:$0xff]
    %v191 = vld [vmem:[%s3 + $0x130] sm:$0xf]
    %v192 = vld [vmem:[%s3 + $0x134] sm:$0xff]
    %v193 = vld [vmem:[%s3 + $0x13c] sm:$0xff]
    %v194 = vld [vmem:[%s3 + $0x144] sm:$0xff]
    %v195 = vld [vmem:[%s3 + $0x14c] sm:$0xf]
    %v196 = vld [vmem:[%s3 + $0x150] sm:$0xff]
    %v197 = vld [vmem:[%s3 + $0x158] sm:$0xff]
    %v198 = vld [vmem:[%s3 + $0x160] sm:$0xff]
    %v199 = vld [vmem:[%s3 + $0x168] sm:$0xf]
    %v200 = vld [vmem:[%s3 + $0x16c] sm:$0xff]
    %v201 = vld [vmem:[%s3 + $0x174] sm:$0xff]
    %v202 = vld [vmem:[%s3 + $0x17c] sm:$0xff]
    %v203 = vld [vmem:[%s3 + $0x184] sm:$0xf]
    %v204 = vld [vmem:[%s3 + $0x188] sm:$0xff]
    %v205 = vld [vmem:[%s3 + $0x190] sm:$0xff]
    %v206 = vld [vmem:[%s3 + $0x198] sm:$0xff]
    %v207 = vld [vmem:[%s3 + $0x1a0] sm:$0xf]
    %v208 = vld [vmem:[%s3 + $0x1a4] sm:$0xff]
    %v209 = vld [vmem:[%s3 + $0x1ac] sm:$0xff]
    %v210 = vld [vmem:[%s3 + $0x1b4] sm:$0xff]
    %v211 = vld [vmem:[%s3 + $0x1bc] sm:$0xf]
    %v212 = vld [vmem:[%s3 + $0x1c0] sm:$0xff]
    %v213 = vld [vmem:[%s3 + $0x1c8] sm:$0xff]
    %v214 = vld [vmem:[%s3 + $0x1d0] sm:$0xff]
    %v215 = vld [vmem:[%s3 + $0x1d8] sm:$0xf]
    %v216 = vld [vmem:[%s3 + $0x1dc] sm:$0xff]
    %v217 = vld [vmem:[%s3 + $0x1e4] sm:$0xff]
    %v218 = vld [vmem:[%s3 + $0x1ec] sm:$0xff]
    %v219 = vld [vmem:[%s3 + $0x1f4] sm:$0xf]
    %v220 = vld [vmem:[%s3 + $0x1f8] sm:$0xff]
    %v221 = vld [vmem:[%s3 + $0x200] sm:$0xff]
    %v222 = vld [vmem:[%s3 + $0x208] sm:$0xff]
    %v223 = vld [vmem:[%s3 + $0x210] sm:$0xf]
    %v224 = vld [vmem:[%s3 + $0x214] sm:$0xff]
    %v225 = vld [vmem:[%s3 + $0x21c] sm:$0xff]
    %v226 = vld [vmem:[%s3 + $0x224] sm:$0xff]
    %v227 = vld [vmem:[%s3 + $0x22c] sm:$0xf]
    %v228 = vld [vmem:[%s3 + $0x230] sm:$0xff]
    %v229 = vld [vmem:[%s3 + $0x238] sm:$0xff]
    %v230 = vld [vmem:[%s3 + $0x240] sm:$0xff]
    %v231 = vld [vmem:[%s3 + $0x248] sm:$0xf]
    %v232 = vld [vmem:[%s3 + $0x24c] sm:$0xff]
    %v233 = vld [vmem:[%s3 + $0x254] sm:$0xff]
    %v234 = vld [vmem:[%s3 + $0x25c] sm:$0xff]
    %v235 = vld [vmem:[%s3 + $0x264] sm:$0xf]
    %v236 = vld [vmem:[%s3 + $0x268] sm:$0xff]
    %v237 = vld [vmem:[%s3 + $0x270] sm:$0xff]
    %v238 = vld [vmem:[%s3 + $0x278] sm:$0xff]
    %v239 = vld [vmem:[%s3 + $0x280] sm:$0xf]
    %v240 = vld [vmem:[%s3 + $0x284] sm:$0xff]
    %v241 = vld [vmem:[%s3 + $0x28c] sm:$0xff]
    %v242 = vld [vmem:[%s3 + $0x294] sm:$0xff]
    %v243 = vld [vmem:[%s3 + $0x29c] sm:$0xf]
    %v244 = vld [vmem:[%s3 + $0x2a0] sm:$0xff]
    %v245 = vld [vmem:[%s3 + $0x2a8] sm:$0xff]
    %v246 = vld [vmem:[%s3 + $0x2b0] sm:$0xff]
    %v247 = vld [vmem:[%s3 + $0x2b8] sm:$0xf]
    %v248 = vld [vmem:[%s3 + $0x2bc] sm:$0xff]
    %v249 = vld [vmem:[%s3 + $0x2c4] sm:$0xff]
    %v250 = vld [vmem:[%s3 + $0x2cc] sm:$0xff]
    %v251 = vld [vmem:[%s3 + $0x2d4] sm:$0xf]
    %v252 = vld [vmem:[%s3 + $0x2d8] sm:$0xff]
    %v253 = vld [vmem:[%s3 + $0x2e0] sm:$0xff]
    %v254 = vld [vmem:[%s3 + $0x2e8] sm:$0xff]
    %v255 = vld [vmem:[%s3 + $0x2f0] sm:$0xf]
    %v256 = vld [vmem:[%s3 + $0x2f4] sm:$0xff]
    %v257 = vld [vmem:[%s3 + $0x2fc] sm:$0xff]
    %v258 = vld [vmem:[%s3 + $0x304] sm:$0xff]
    %v259 = vld [vmem:[%s3 + $0x30c] sm:$0xf]
    %v260 = vld [vmem:[%s3 + $0x310] sm:$0xff]
    %v261 = vld [vmem:[%s3 + $0x318] sm:$0xff]
    %v262 = vld [vmem:[%s3 + $0x320] sm:$0xff]
    %v263 = vld [vmem:[%s3 + $0x328] sm:$0xf]
    %v264 = vld [vmem:[%s3 + $0x32c] sm:$0xff]
    %v265 = vld [vmem:[%s3 + $0x334] sm:$0xff]
    %v266 = vld [vmem:[%s3 + $0x33c] sm:$0xff]
    %v267 = vld [vmem:[%s3 + $0x344] sm:$0xf]
    %v268 = vld [vmem:[%s3 + $0x348] sm:$0xff]
    %v269 = vld [vmem:[%s3 + $0x350] sm:$0xff]
    %v270 = vld [vmem:[%s3 + $0x358] sm:$0xff]
    %v271 = vld [vmem:[%s3 + $0x360] sm:$0xf]
    %v272 = vld [vmem:[%s3 + $0x364] sm:$0xff]
    %v273 = vld [vmem:[%s3 + $0x36c] sm:$0xff]
    %v274 = vld [vmem:[%s3 + $0x374] sm:$0xff]
    %v275 = vld [vmem:[%s3 + $0x37c] sm:$0xf]
    %v276 = vld [vmem:[%s3 + $0x380] sm:$0xff]
    %v277 = vld [vmem:[%s3 + $0x388] sm:$0xff]
    %v278 = vld [vmem:[%s3 + $0x390] sm:$0xff]
    %v279 = vld [vmem:[%s3 + $0x398] sm:$0xf]
    %v280 = vld [vmem:[%s3 + $0x39c] sm:$0xff]
    %v281 = vld [vmem:[%s3 + $0x3a4] sm:$0xff]
    %v282 = vld [vmem:[%s3 + $0x3ac] sm:$0xff]
    %v283 = vld [vmem:[%s3 + $0x3b4] sm:$0xf]
    %v284 = vld [vmem:[%s3 + $0x3b8] sm:$0xff]
    %v285 = vld [vmem:[%s3 + $0x3c0] sm:$0xff]
    %v286 = vld [vmem:[%s3 + $0x3c8] sm:$0xff]
    %v287 = vld [vmem:[%s3 + $0x3d0] sm:$0xf]
    %v288 = vld [vmem:[%s3 + $0x3d4] sm:$0xff]
    %v289 = vld [vmem:[%s3 + $0x3dc] sm:$0xff]
    %v290 = vld [vmem:[%s3 + $0x3e4] sm:$0xff]
    %v291 = vld [vmem:[%s3 + $0x3ec] sm:$0xf]
    %v292 = vld [vmem:[%s3 + $0x3f0] sm:$0xff]
    %v293 = vld [vmem:[%s3 + $0x3f8] sm:$0xff]
    %v294 = vld [vmem:[%s3 + $0x400] sm:$0xff]
    %v295 = vld [vmem:[%s3 + $0x408] sm:$0xf]
    %v296 = vld [vmem:[%s3 + $0x40c] sm:$0xff]
    %v297 = vld [vmem:[%s3 + $0x414] sm:$0xff]
    %v298 = vld [vmem:[%s3 + $0x41c] sm:$0xff]
    %v299 = vld [vmem:[%s3 + $0x424] sm:$0xf]
    %v300 = vld [vmem:[%s3 + $0x428] sm:$0xff]
    %v301 = vld [vmem:[%s3 + $0x430] sm:$0xff]
    %v302 = vld [vmem:[%s3 + $0x438] sm:$0xff]
    %v303 = vld [vmem:[%s3 + $0x440] sm:$0xf]
    %v304 = vld [vmem:[%s3 + $0x444] sm:$0xff]
    %v305 = vld [vmem:[%s3 + $0x44c] sm:$0xff]
    %v306 = vld [vmem:[%s3 + $0x454] sm:$0xff]
    %v307 = vld [vmem:[%s3 + $0x45c] sm:$0xf]
    %v308 = vld [vmem:[%s3 + $0x460] sm:$0xff]
    %v309 = vld [vmem:[%s3 + $0x468] sm:$0xff]
    %v310 = vld [vmem:[%s3 + $0x470] sm:$0xff]
    %v311 = vld [vmem:[%s3 + $0x478] sm:$0xf]
    %v312 = vld [vmem:[%s3 + $0x47c] sm:$0xff]
    %v313 = vld [vmem:[%s3 + $0x484] sm:$0xff]
    %v314 = vld [vmem:[%s3 + $0x48c] sm:$0xff]
    %v315 = vld [vmem:[%s3 + $0x494] sm:$0xf]
    %v316 = vld [vmem:[%s3 + $0x498] sm:$0xff]
    %v317 = vld [vmem:[%s3 + $0x4a0] sm:$0xff]
    %v318 = vld [vmem:[%s3 + $0x4a8] sm:$0xff]
    %v319 = vld [vmem:[%s3 + $0x4b0] sm:$0xf]
    %v320 = vld [vmem:[%s3 + $0x4b4] sm:$0xff]
    %v321 = vld [vmem:[%s3 + $0x4bc] sm:$0xff]
    %v322 = vld [vmem:[%s3 + $0x4c4] sm:$0xff]
    %v323 = vld [vmem:[%s3 + $0x4cc] sm:$0xf]
    %v324 = vld [vmem:[%s3 + $0x4d0] sm:$0xff]
    %v325 = vld [vmem:[%s3 + $0x4d8] sm:$0xff]
    %v326 = vld [vmem:[%s3 + $0x4e0] sm:$0xff]
    %v327 = vld [vmem:[%s3 + $0x4e8] sm:$0xf]
    %v328 = vld [vmem:[%s3 + $0x4ec] sm:$0xff]
    %v329 = vld [vmem:[%s3 + $0x4f4] sm:$0xff]
    %v330 = vld [vmem:[%s3 + $0x4fc] sm:$0xff]
    %v331 = vld [vmem:[%s3 + $0x504] sm:$0xf]
    %v332 = vld [vmem:[%s3 + $0x508] sm:$0xff]
    %v333 = vld [vmem:[%s3 + $0x510] sm:$0xff]
    %v334 = vld [vmem:[%s3 + $0x518] sm:$0xff]
    %v335 = vld [vmem:[%s3 + $0x520] sm:$0xf]
    %v336 = vld [vmem:[%s3 + $0x524] sm:$0xff]
    %v337 = vld [vmem:[%s3 + $0x52c] sm:$0xff]
    %v338 = vld [vmem:[%s3 + $0x534] sm:$0xff]
    %v339 = vld [vmem:[%s3 + $0x53c] sm:$0xf]
    %v340 = vld [vmem:[%s3 + $0x540] sm:$0xff]
    %v341 = vld [vmem:[%s3 + $0x548] sm:$0xff]
    %v342 = vld [vmem:[%s3 + $0x550] sm:$0xff]
    %v343 = vld [vmem:[%s3 + $0x558] sm:$0xf]
    %v344 = vld [vmem:[%s3 + $0x55c] sm:$0xff]
    %v345 = vld [vmem:[%s3 + $0x564] sm:$0xff]
    %v346 = vld [vmem:[%s3 + $0x56c] sm:$0xff]
    %v347 = vld [vmem:[%s3 + $0x574] sm:$0xf]
    %v348 = vld [vmem:[%s3 + $0x578] sm:$0xff]
    %v349 = vld [vmem:[%s3 + $0x580] sm:$0xff]
    %v350 = vld [vmem:[%s3 + $0x588] sm:$0xff]
    %v351 = vld [vmem:[%s3 + $0x590] sm:$0xf]
    %v352 = vld [vmem:[%s3 + $0x594] sm:$0xff]
    %v353 = vld [vmem:[%s3 + $0x59c] sm:$0xff]
    %v354 = vld [vmem:[%s3 + $0x5a4] sm:$0xff]
    %v355 = vld [vmem:[%s3 + $0x5ac] sm:$0xf]
    %v356 = vld [vmem:[%s3 + $0x5b0] sm:$0xff]
    %v357 = vld [vmem:[%s3 + $0x5b8] sm:$0xff]
    %v358 = vld [vmem:[%s3 + $0x5c0] sm:$0xff]
    %v359 = vld [vmem:[%s3 + $0x5c8] sm:$0xf]
    %v360 = vld [vmem:[%s3 + $0x5cc] sm:$0xff]
    %v361 = vld [vmem:[%s3 + $0x5d4] sm:$0xff]
    %v362 = vld [vmem:[%s3 + $0x5dc] sm:$0xff]
    %v363 = vld [vmem:[%s3 + $0x5e4] sm:$0xf]
    %v364 = vld [vmem:[%s3 + $0x5e8] sm:$0xff]
    %v365 = vld [vmem:[%s3 + $0x5f0] sm:$0xff]
    %v366 = vld [vmem:[%s3 + $0x5f8] sm:$0xff]
    %v367 = vld [vmem:[%s3 + $0x600] sm:$0xf]
    %v368 = vld [vmem:[%s3 + $0x604] sm:$0xff]
    %v369 = vld [vmem:[%s3 + $0x60c] sm:$0xff]
    %v370 = vld [vmem:[%s3 + $0x614] sm:$0xff]
    %v371 = vld [vmem:[%s3 + $0x61c] sm:$0xf]
    %v372 = vld [vmem:[%s3 + $0x620] sm:$0xff]
    %v373 = vld [vmem:[%s3 + $0x628] sm:$0xff]
    %v374 = vld [vmem:[%s3 + $0x630] sm:$0xff]
    %v375 = vld [vmem:[%s3 + $0x638] sm:$0xf]
    %v376 = vld [vmem:[%s3 + $0x63c] sm:$0xff]
    %v377 = vld [vmem:[%s3 + $0x644] sm:$0xff]
    %v378 = vld [vmem:[%s3 + $0x64c] sm:$0xff]
    %v379 = vld [vmem:[%s3 + $0x654] sm:$0xf]
    %v380 = vld [vmem:[%s3 + $0x658] sm:$0xff]
    %v381 = vld [vmem:[%s3 + $0x660] sm:$0xff]
    %v382 = vld [vmem:[%s3 + $0x668] sm:$0xff]
    %v383 = vld [vmem:[%s3 + $0x670] sm:$0xf]
    %v384 = vld [vmem:[%s3 + $0x674] sm:$0xff]
    %v385 = vld [vmem:[%s3 + $0x67c] sm:$0xff]
    %v386 = vld [vmem:[%s3 + $0x684] sm:$0xff]
    %v387 = vld [vmem:[%s3 + $0x68c] sm:$0xf]
    %v388 = vld [vmem:[%s3 + $0x690] sm:$0xff]
    %v389 = vld [vmem:[%s3 + $0x698] sm:$0xff]
    %v390 = vld [vmem:[%s3 + $0x6a0] sm:$0xff]
    %v391 = vld [vmem:[%s3 + $0x6a8] sm:$0xf]
    %v392 = vld [vmem:[%s3 + $0x6ac] sm:$0xff]
    %v393 = vld [vmem:[%s3 + $0x6b4] sm:$0xff]
    %v394 = vld [vmem:[%s3 + $0x6bc] sm:$0xff]
    %v395 = vld [vmem:[%s3 + $0x6c4] sm:$0xf]
    %v396 = vld [vmem:[%s3 + $0x6c8] sm:$0xff]
    %v397 = vld [vmem:[%s3 + $0x6d0] sm:$0xff]
    %v398 = vld [vmem:[%s3 + $0x6d8] sm:$0xff]
    %v399 = vld [vmem:[%s3 + $0x6e0] sm:$0xf]
    %v400 = vld [vmem:[%s3 + $0x6e4] sm:$0xff]
    %v401 = vld [vmem:[%s3 + $0x6ec] sm:$0xff]
    %v402 = vld [vmem:[%s3 + $0x6f4] sm:$0xff]
    %v403 = vld [vmem:[%s3 + $0x6fc] sm:$0xf]
    %v404 = vld [vmem:[%s4] sm:$0x7f]
    %v406 = vperm.slane %v404, 0
    %v407 = vperm.slane %v404, 1
    %v408 = vperm.slane %v404, 2
    %v409 = vperm.slane %v404, 3
    %v410 = vperm.slane %v404, 4
    %v411 = vperm.slane %v404, 5
    %v412 = vperm.slane %v404, 6
    %v422 = vunpack.c.l.b16 %v146
    %v423 = vunpack.c.h.b16 %v146
    %v424 = vunpack.c.l.b16 %v147
    %v425 = vunpack.c.h.b16 %v147
    %v426 = vpack.c.b16 %v422, %v422
    %v427 = vpack.c.b16 %v423, %v423
    %v428 = vpack.c.b16 %v424, %v424
    %v429 = vpack.c.b16 %v425, %v425
    %v690 = vunpack.c.l.b16 %v148
    %v691 = vunpack.c.h.b16 %v148
    %v692 = vunpack.c.l.b16 %v149
    %v693 = vunpack.c.h.b16 %v149
    %v694 = vunpack.c.l.b16 %v150
    %v695 = vunpack.c.h.b16 %v150
    %v696 = vunpack.c.l.b16 %v151
    %v697 = vunpack.c.l.b16 %v152
    %v698 = vunpack.c.h.b16 %v152
    %v699 = vunpack.c.l.b16 %v153
    %v700 = vunpack.c.h.b16 %v153
    %v701 = vunpack.c.l.b16 %v154
    %v702 = vunpack.c.h.b16 %v154
    %v703 = vunpack.c.l.b16 %v155
    %v704 = vunpack.c.l.b16 %v156
    %v705 = vunpack.c.h.b16 %v156
    %v706 = vunpack.c.l.b16 %v157
    %v707 = vunpack.c.h.b16 %v157
    %v708 = vunpack.c.l.b16 %v158
    %v709 = vunpack.c.h.b16 %v158
    %v710 = vunpack.c.l.b16 %v159
    %v711 = vunpack.c.l.b16 %v160
    %v712 = vunpack.c.h.b16 %v160
    %v713 = vunpack.c.l.b16 %v161
    %v714 = vunpack.c.h.b16 %v161
    %v715 = vunpack.c.l.b16 %v162
    %v716 = vunpack.c.h.b16 %v162
    %v717 = vunpack.c.l.b16 %v163
    %v718 = vunpack.c.l.b16 %v164
    %v719 = vunpack.c.h.b16 %v164
    %v720 = vunpack.c.l.b16 %v165
    %v721 = vunpack.c.h.b16 %v165
    %v722 = vunpack.c.l.b16 %v166
    %v723 = vunpack.c.h.b16 %v166
    %v724 = vunpack.c.l.b16 %v167
    %v725 = vunpack.c.l.b16 %v168
    %v726 = vunpack.c.h.b16 %v168
    %v727 = vunpack.c.l.b16 %v169
    %v728 = vunpack.c.h.b16 %v169
    %v729 = vunpack.c.l.b16 %v170
    %v730 = vunpack.c.h.b16 %v170
    %v731 = vunpack.c.l.b16 %v171
    %v732 = vunpack.c.l.b16 %v172
    %v733 = vunpack.c.h.b16 %v172
    %v734 = vunpack.c.l.b16 %v173
    %v735 = vunpack.c.h.b16 %v173
    %v736 = vunpack.c.l.b16 %v174
    %v737 = vunpack.c.h.b16 %v174
    %v738 = vunpack.c.l.b16 %v175
    %v739 = vunpack.c.l.b16 %v176
    %v740 = vunpack.c.h.b16 %v176
    %v741 = vunpack.c.l.b16 %v177
    %v742 = vunpack.c.h.b16 %v177
    %v743 = vunpack.c.l.b16 %v178
    %v744 = vunpack.c.h.b16 %v178
    %v745 = vunpack.c.l.b16 %v179
    %v746 = vunpack.c.l.b16 %v180
    %v747 = vunpack.c.h.b16 %v180
    %v748 = vunpack.c.l.b16 %v181
    %v749 = vunpack.c.h.b16 %v181
    %v750 = vunpack.c.l.b16 %v182
    %v751 = vunpack.c.h.b16 %v182
    %v752 = vunpack.c.l.b16 %v183
    %v753 = vunpack.c.l.b16 %v184
    %v754 = vunpack.c.h.b16 %v184
    %v755 = vunpack.c.l.b16 %v185
    %v756 = vunpack.c.h.b16 %v185
    %v757 = vunpack.c.l.b16 %v186
    %v758 = vunpack.c.h.b16 %v186
    %v759 = vunpack.c.l.b16 %v187
    %v760 = vunpack.c.l.b16 %v188
    %v761 = vunpack.c.h.b16 %v188
    %v762 = vunpack.c.l.b16 %v189
    %v763 = vunpack.c.h.b16 %v189
    %v764 = vunpack.c.l.b16 %v190
    %v765 = vunpack.c.h.b16 %v190
    %v766 = vunpack.c.l.b16 %v191
    %v767 = vunpack.c.l.b16 %v192
    %v768 = vunpack.c.h.b16 %v192
    %v769 = vunpack.c.l.b16 %v193
    %v770 = vunpack.c.h.b16 %v193
    %v771 = vunpack.c.l.b16 %v194
    %v772 = vunpack.c.h.b16 %v194
    %v773 = vunpack.c.l.b16 %v195
    %v774 = vunpack.c.l.b16 %v196
    %v775 = vunpack.c.h.b16 %v196
    %v776 = vunpack.c.l.b16 %v197
    %v777 = vunpack.c.h.b16 %v197
    %v778 = vunpack.c.l.b16 %v198
    %v779 = vunpack.c.h.b16 %v198
    %v780 = vunpack.c.l.b16 %v199
    %v781 = vunpack.c.l.b16 %v200
    %v782 = vunpack.c.h.b16 %v200
    %v783 = vunpack.c.l.b16 %v201
    %v784 = vunpack.c.h.b16 %v201
    %v785 = vunpack.c.l.b16 %v202
    %v786 = vunpack.c.h.b16 %v202
    %v787 = vunpack.c.l.b16 %v203
    %v788 = vunpack.c.l.b16 %v204
    %v789 = vunpack.c.h.b16 %v204
    %v790 = vunpack.c.l.b16 %v205
    %v791 = vunpack.c.h.b16 %v205
    %v792 = vunpack.c.l.b16 %v206
    %v793 = vunpack.c.h.b16 %v206
    %v794 = vunpack.c.l.b16 %v207
    %v795 = vunpack.c.l.b16 %v208
    %v796 = vunpack.c.h.b16 %v208
    %v797 = vunpack.c.l.b16 %v209
    %v798 = vunpack.c.h.b16 %v209
    %v799 = vunpack.c.l.b16 %v210
    %v800 = vunpack.c.h.b16 %v210
    %v801 = vunpack.c.l.b16 %v211
    %v802 = vunpack.c.l.b16 %v212
    %v803 = vunpack.c.h.b16 %v212
    %v804 = vunpack.c.l.b16 %v213
    %v805 = vunpack.c.h.b16 %v213
    %v806 = vunpack.c.l.b16 %v214
    %v807 = vunpack.c.h.b16 %v214
    %v808 = vunpack.c.l.b16 %v215
    %v809 = vunpack.c.l.b16 %v216
    %v810 = vunpack.c.h.b16 %v216
    %v811 = vunpack.c.l.b16 %v217
    %v812 = vunpack.c.h.b16 %v217
    %v813 = vunpack.c.l.b16 %v218
    %v814 = vunpack.c.h.b16 %v218
    %v815 = vunpack.c.l.b16 %v219
    %v816 = vunpack.c.l.b16 %v220
    %v817 = vunpack.c.h.b16 %v220
    %v818 = vunpack.c.l.b16 %v221
    %v819 = vunpack.c.h.b16 %v221
    %v820 = vunpack.c.l.b16 %v222
    %v821 = vunpack.c.h.b16 %v222
    %v822 = vunpack.c.l.b16 %v223
    %v823 = vunpack.c.l.b16 %v224
    %v824 = vunpack.c.h.b16 %v224
    %v825 = vunpack.c.l.b16 %v225
    %v826 = vunpack.c.h.b16 %v225
    %v827 = vunpack.c.l.b16 %v226
    %v828 = vunpack.c.h.b16 %v226
    %v829 = vunpack.c.l.b16 %v227
    %v830 = vunpack.c.l.b16 %v228
    %v831 = vunpack.c.h.b16 %v228
    %v832 = vunpack.c.l.b16 %v229
    %v833 = vunpack.c.h.b16 %v229
    %v834 = vunpack.c.l.b16 %v230
    %v835 = vunpack.c.h.b16 %v230
    %v836 = vunpack.c.l.b16 %v231
    %v837 = vunpack.c.l.b16 %v232
    %v838 = vunpack.c.h.b16 %v232
    %v839 = vunpack.c.l.b16 %v233
    %v840 = vunpack.c.h.b16 %v233
    %v841 = vunpack.c.l.b16 %v234
    %v842 = vunpack.c.h.b16 %v234
    %v843 = vunpack.c.l.b16 %v235
    %v844 = vunpack.c.l.b16 %v236
    %v845 = vunpack.c.h.b16 %v236
    %v846 = vunpack.c.l.b16 %v237
    %v847 = vunpack.c.h.b16 %v237
    %v848 = vunpack.c.l.b16 %v238
    %v849 = vunpack.c.h.b16 %v238
    %v850 = vunpack.c.l.b16 %v239
    %v851 = vunpack.c.l.b16 %v240
    %v852 = vunpack.c.h.b16 %v240
    %v853 = vunpack.c.l.b16 %v241
    %v854 = vunpack.c.h.b16 %v241
    %v855 = vunpack.c.l.b16 %v242
    %v856 = vunpack.c.h.b16 %v242
    %v857 = vunpack.c.l.b16 %v243
    %v858 = vunpack.c.l.b16 %v244
    %v859 = vunpack.c.h.b16 %v244
    %v860 = vunpack.c.l.b16 %v245
    %v861 = vunpack.c.h.b16 %v245
    %v862 = vunpack.c.l.b16 %v246
    %v863 = vunpack.c.h.b16 %v246
    %v864 = vunpack.c.l.b16 %v247
    %v865 = vunpack.c.l.b16 %v248
    %v866 = vunpack.c.h.b16 %v248
    %v867 = vunpack.c.l.b16 %v249
    %v868 = vunpack.c.h.b16 %v249
    %v869 = vunpack.c.l.b16 %v250
    %v870 = vunpack.c.h.b16 %v250
    %v871 = vunpack.c.l.b16 %v251
    %v872 = vunpack.c.l.b16 %v252
    %v873 = vunpack.c.h.b16 %v252
    %v874 = vunpack.c.l.b16 %v253
    %v875 = vunpack.c.h.b16 %v253
    %v876 = vunpack.c.l.b16 %v254
    %v877 = vunpack.c.h.b16 %v254
    %v878 = vunpack.c.l.b16 %v255
    %v879 = vunpack.c.l.b16 %v256
    %v880 = vunpack.c.h.b16 %v256
    %v881 = vunpack.c.l.b16 %v257
    %v882 = vunpack.c.h.b16 %v257
    %v883 = vunpack.c.l.b16 %v258
    %v884 = vunpack.c.h.b16 %v258
    %v885 = vunpack.c.l.b16 %v259
    %v886 = vunpack.c.l.b16 %v260
    %v887 = vunpack.c.h.b16 %v260
    %v888 = vunpack.c.l.b16 %v261
    %v889 = vunpack.c.h.b16 %v261
    %v890 = vunpack.c.l.b16 %v262
    %v891 = vunpack.c.h.b16 %v262
    %v892 = vunpack.c.l.b16 %v263
    %v893 = vunpack.c.l.b16 %v264
    %v894 = vunpack.c.h.b16 %v264
    %v895 = vunpack.c.l.b16 %v265
    %v896 = vunpack.c.h.b16 %v265
    %v897 = vunpack.c.l.b16 %v266
    %v898 = vunpack.c.h.b16 %v266
    %v899 = vunpack.c.l.b16 %v267
    %v900 = vunpack.c.l.b16 %v268
    %v901 = vunpack.c.h.b16 %v268
    %v902 = vunpack.c.l.b16 %v269
    %v903 = vunpack.c.h.b16 %v269
    %v904 = vunpack.c.l.b16 %v270
    %v905 = vunpack.c.h.b16 %v270
    %v906 = vunpack.c.l.b16 %v271
    %v907 = vunpack.c.l.b16 %v272
    %v908 = vunpack.c.h.b16 %v272
    %v909 = vunpack.c.l.b16 %v273
    %v910 = vunpack.c.h.b16 %v273
    %v911 = vunpack.c.l.b16 %v274
    %v912 = vunpack.c.h.b16 %v274
    %v913 = vunpack.c.l.b16 %v275
    %v914 = vunpack.c.l.b16 %v276
    %v915 = vunpack.c.h.b16 %v276
    %v916 = vunpack.c.l.b16 %v277
    %v917 = vunpack.c.h.b16 %v277
    %v918 = vunpack.c.l.b16 %v278
    %v919 = vunpack.c.h.b16 %v278
    %v920 = vunpack.c.l.b16 %v279
    %v921 = vunpack.c.l.b16 %v280
    %v922 = vunpack.c.h.b16 %v280
    %v923 = vunpack.c.l.b16 %v281
    %v924 = vunpack.c.h.b16 %v281
    %v925 = vunpack.c.l.b16 %v282
    %v926 = vunpack.c.h.b16 %v282
    %v927 = vunpack.c.l.b16 %v283
    %v928 = vunpack.c.l.b16 %v284
    %v929 = vunpack.c.h.b16 %v284
    %v930 = vunpack.c.l.b16 %v285
    %v931 = vunpack.c.h.b16 %v285
    %v932 = vunpack.c.l.b16 %v286
    %v933 = vunpack.c.h.b16 %v286
    %v934 = vunpack.c.l.b16 %v287
    %v935 = vunpack.c.l.b16 %v288
    %v936 = vunpack.c.h.b16 %v288
    %v937 = vunpack.c.l.b16 %v289
    %v938 = vunpack.c.h.b16 %v289
    %v939 = vunpack.c.l.b16 %v290
    %v940 = vunpack.c.h.b16 %v290
    %v941 = vunpack.c.l.b16 %v291
    %v942 = vunpack.c.l.b16 %v292
    %v943 = vunpack.c.h.b16 %v292
    %v944 = vunpack.c.l.b16 %v293
    %v945 = vunpack.c.h.b16 %v293
    %v946 = vunpack.c.l.b16 %v294
    %v947 = vunpack.c.h.b16 %v294
    %v948 = vunpack.c.l.b16 %v295
    %v949 = vunpack.c.l.b16 %v296
    %v950 = vunpack.c.h.b16 %v296
    %v951 = vunpack.c.l.b16 %v297
    %v952 = vunpack.c.h.b16 %v297
    %v953 = vunpack.c.l.b16 %v298
    %v954 = vunpack.c.h.b16 %v298
    %v955 = vunpack.c.l.b16 %v299
    %v956 = vunpack.c.l.b16 %v300
    %v957 = vunpack.c.h.b16 %v300
    %v958 = vunpack.c.l.b16 %v301
    %v959 = vunpack.c.h.b16 %v301
    %v960 = vunpack.c.l.b16 %v302
    %v961 = vunpack.c.h.b16 %v302
    %v962 = vunpack.c.l.b16 %v303
    %v963 = vunpack.c.l.b16 %v304
    %v964 = vunpack.c.h.b16 %v304
    %v965 = vunpack.c.l.b16 %v305
    %v966 = vunpack.c.h.b16 %v305
    %v967 = vunpack.c.l.b16 %v306
    %v968 = vunpack.c.h.b16 %v306
    %v969 = vunpack.c.l.b16 %v307
    %v970 = vunpack.c.l.b16 %v308
    %v971 = vunpack.c.h.b16 %v308
    %v972 = vunpack.c.l.b16 %v309
    %v973 = vunpack.c.h.b16 %v309
    %v974 = vunpack.c.l.b16 %v310
    %v975 = vunpack.c.h.b16 %v310
    %v976 = vunpack.c.l.b16 %v311
    %v977 = vunpack.c.l.b16 %v312
    %v978 = vunpack.c.h.b16 %v312
    %v979 = vunpack.c.l.b16 %v313
    %v980 = vunpack.c.h.b16 %v313
    %v981 = vunpack.c.l.b16 %v314
    %v982 = vunpack.c.h.b16 %v314
    %v983 = vunpack.c.l.b16 %v315
    %v984 = vunpack.c.l.b16 %v316
    %v985 = vunpack.c.h.b16 %v316
    %v986 = vunpack.c.l.b16 %v317
    %v987 = vunpack.c.h.b16 %v317
    %v988 = vunpack.c.l.b16 %v318
    %v989 = vunpack.c.h.b16 %v318
    %v990 = vunpack.c.l.b16 %v319
    %v991 = vunpack.c.l.b16 %v320
    %v992 = vunpack.c.h.b16 %v320
    %v993 = vunpack.c.l.b16 %v321
    %v994 = vunpack.c.h.b16 %v321
    %v995 = vunpack.c.l.b16 %v322
    %v996 = vunpack.c.h.b16 %v322
    %v997 = vunpack.c.l.b16 %v323
    %v998 = vunpack.c.l.b16 %v324
    %v999 = vunpack.c.h.b16 %v324
    %v1000 = vunpack.c.l.b16 %v325
    %v1001 = vunpack.c.h.b16 %v325
    %v1002 = vunpack.c.l.b16 %v326
    %v1003 = vunpack.c.h.b16 %v326
    %v1004 = vunpack.c.l.b16 %v327
    %v1005 = vunpack.c.l.b16 %v328
    %v1006 = vunpack.c.h.b16 %v328
    %v1007 = vunpack.c.l.b16 %v329
    %v1008 = vunpack.c.h.b16 %v329
    %v1009 = vunpack.c.l.b16 %v330
    %v1010 = vunpack.c.h.b16 %v330
    %v1011 = vunpack.c.l.b16 %v331
    %v1012 = vunpack.c.l.b16 %v332
    %v1013 = vunpack.c.h.b16 %v332
    %v1014 = vunpack.c.l.b16 %v333
    %v1015 = vunpack.c.h.b16 %v333
    %v1016 = vunpack.c.l.b16 %v334
    %v1017 = vunpack.c.h.b16 %v334
    %v1018 = vunpack.c.l.b16 %v335
    %v1019 = vunpack.c.l.b16 %v336
    %v1020 = vunpack.c.h.b16 %v336
    %v1021 = vunpack.c.l.b16 %v337
    %v1022 = vunpack.c.h.b16 %v337
    %v1023 = vunpack.c.l.b16 %v338
    %v1024 = vunpack.c.h.b16 %v338
    %v1025 = vunpack.c.l.b16 %v339
    %v1026 = vunpack.c.l.b16 %v340
    %v1027 = vunpack.c.h.b16 %v340
    %v1028 = vunpack.c.l.b16 %v341
    %v1029 = vunpack.c.h.b16 %v341
    %v1030 = vunpack.c.l.b16 %v342
    %v1031 = vunpack.c.h.b16 %v342
    %v1032 = vunpack.c.l.b16 %v343
    %v1033 = vunpack.c.l.b16 %v344
    %v1034 = vunpack.c.h.b16 %v344
    %v1035 = vunpack.c.l.b16 %v345
    %v1036 = vunpack.c.h.b16 %v345
    %v1037 = vunpack.c.l.b16 %v346
    %v1038 = vunpack.c.h.b16 %v346
    %v1039 = vunpack.c.l.b16 %v347
    %v1040 = vunpack.c.l.b16 %v348
    %v1041 = vunpack.c.h.b16 %v348
    %v1042 = vunpack.c.l.b16 %v349
    %v1043 = vunpack.c.h.b16 %v349
    %v1044 = vunpack.c.l.b16 %v350
    %v1045 = vunpack.c.h.b16 %v350
    %v1046 = vunpack.c.l.b16 %v351
    %v1047 = vunpack.c.l.b16 %v352
    %v1048 = vunpack.c.h.b16 %v352
    %v1049 = vunpack.c.l.b16 %v353
    %v1050 = vunpack.c.h.b16 %v353
    %v1051 = vunpack.c.l.b16 %v354
    %v1052 = vunpack.c.h.b16 %v354
    %v1053 = vunpack.c.l.b16 %v355
    %v1054 = vunpack.c.l.b16 %v356
    %v1055 = vunpack.c.h.b16 %v356
    %v1056 = vunpack.c.l.b16 %v357
    %v1057 = vunpack.c.h.b16 %v357
    %v1058 = vunpack.c.l.b16 %v358
    %v1059 = vunpack.c.h.b16 %v358
    %v1060 = vunpack.c.l.b16 %v359
    %v1061 = vunpack.c.l.b16 %v360
    %v1062 = vunpack.c.h.b16 %v360
    %v1063 = vunpack.c.l.b16 %v361
    %v1064 = vunpack.c.h.b16 %v361
    %v1065 = vunpack.c.l.b16 %v362
    %v1066 = vunpack.c.h.b16 %v362
    %v1067 = vunpack.c.l.b16 %v363
    %v1068 = vunpack.c.l.b16 %v364
    %v1069 = vunpack.c.h.b16 %v364
    %v1070 = vunpack.c.l.b16 %v365
    %v1071 = vunpack.c.h.b16 %v365
    %v1072 = vunpack.c.l.b16 %v366
    %v1073 = vunpack.c.h.b16 %v366
    %v1074 = vunpack.c.l.b16 %v367
    %v1075 = vunpack.c.l.b16 %v368
    %v1076 = vunpack.c.h.b16 %v368
    %v1077 = vunpack.c.l.b16 %v369
    %v1078 = vunpack.c.h.b16 %v369
    %v1079 = vunpack.c.l.b16 %v370
    %v1080 = vunpack.c.h.b16 %v370
    %v1081 = vunpack.c.l.b16 %v371
    %v1082 = vunpack.c.l.b16 %v372
    %v1083 = vunpack.c.h.b16 %v372
    %v1084 = vunpack.c.l.b16 %v373
    %v1085 = vunpack.c.h.b16 %v373
    %v1086 = vunpack.c.l.b16 %v374
    %v1087 = vunpack.c.h.b16 %v374
    %v1088 = vunpack.c.l.b16 %v375
    %v1089 = vunpack.c.l.b16 %v376
    %v1090 = vunpack.c.h.b16 %v376
    %v1091 = vunpack.c.l.b16 %v377
    %v1092 = vunpack.c.h.b16 %v377
    %v1093 = vunpack.c.l.b16 %v378
    %v1094 = vunpack.c.h.b16 %v378
    %v1095 = vunpack.c.l.b16 %v379
    %v1096 = vunpack.c.l.b16 %v380
    %v1097 = vunpack.c.h.b16 %v380
    %v1098 = vunpack.c.l.b16 %v381
    %v1099 = vunpack.c.h.b16 %v381
    %v1100 = vunpack.c.l.b16 %v382
    %v1101 = vunpack.c.h.b16 %v382
    %v1102 = vunpack.c.l.b16 %v383
    %v1103 = vunpack.c.l.b16 %v384
    %v1104 = vunpack.c.h.b16 %v384
    %v1105 = vunpack.c.l.b16 %v385
    %v1106 = vunpack.c.h.b16 %v385
    %v1107 = vunpack.c.l.b16 %v386
    %v1108 = vunpack.c.h.b16 %v386
    %v1109 = vunpack.c.l.b16 %v387
    %v1110 = vunpack.c.l.b16 %v388
    %v1111 = vunpack.c.h.b16 %v388
    %v1112 = vunpack.c.l.b16 %v389
    %v1113 = vunpack.c.h.b16 %v389
    %v1114 = vunpack.c.l.b16 %v390
    %v1115 = vunpack.c.h.b16 %v390
    %v1116 = vunpack.c.l.b16 %v391
    %v1117 = vunpack.c.l.b16 %v392
    %v1118 = vunpack.c.h.b16 %v392
    %v1119 = vunpack.c.l.b16 %v393
    %v1120 = vunpack.c.h.b16 %v393
    %v1121 = vunpack.c.l.b16 %v394
    %v1122 = vunpack.c.h.b16 %v394
    %v1123 = vunpack.c.l.b16 %v395
    %v1124 = vunpack.c.l.b16 %v396
    %v1125 = vunpack.c.h.b16 %v396
    %v1126 = vunpack.c.l.b16 %v397
    %v1127 = vunpack.c.h.b16 %v397
    %v1128 = vunpack.c.l.b16 %v398
    %v1129 = vunpack.c.h.b16 %v398
    %v1130 = vunpack.c.l.b16 %v399
    %v1131 = vunpack.c.l.b16 %v400
    %v1132 = vunpack.c.h.b16 %v400
    %v1133 = vunpack.c.l.b16 %v401
    %v1134 = vunpack.c.h.b16 %v401
    %v1135 = vunpack.c.l.b16 %v402
    %v1136 = vunpack.c.h.b16 %v402
    %v1137 = vunpack.c.l.b16 %v403
    %v1138 = vpack.c.b16 %v697, %v690
    %v1139 = vpack.c.b16 %v698, %v691
    %v1140 = vpack.c.b16 %v699, %v692
    %v1141 = vpack.c.b16 %v700, %v693
    %v1142 = vpack.c.b16 %v701, %v694
    %v1143 = vpack.c.b16 %v702, %v695
    %v1144 = vpack.c.b16 %v703, %v696
    %v1145 = vpack.c.b16 %v711, %v704
    %v1146 = vpack.c.b16 %v712, %v705
    %v1147 = vpack.c.b16 %v713, %v706
    %v1148 = vpack.c.b16 %v714, %v707
    %v1149 = vpack.c.b16 %v715, %v708
    %v1150 = vpack.c.b16 %v716, %v709
    %v1151 = vpack.c.b16 %v717, %v710
    %v1152 = vpack.c.b16 %v725, %v718
    %v1153 = vpack.c.b16 %v726, %v719
    %v1154 = vpack.c.b16 %v727, %v720
    %v1155 = vpack.c.b16 %v728, %v721
    %v1156 = vpack.c.b16 %v729, %v722
    %v1157 = vpack.c.b16 %v730, %v723
    %v1158 = vpack.c.b16 %v731, %v724
    %v1159 = vpack.c.b16 %v739, %v732
    %v1160 = vpack.c.b16 %v740, %v733
    %v1161 = vpack.c.b16 %v741, %v734
    %v1162 = vpack.c.b16 %v742, %v735
    %v1163 = vpack.c.b16 %v743, %v736
    %v1164 = vpack.c.b16 %v744, %v737
    %v1165 = vpack.c.b16 %v745, %v738
    %v1166 = vpack.c.b16 %v753, %v746
    %v1167 = vpack.c.b16 %v754, %v747
    %v1168 = vpack.c.b16 %v755, %v748
    %v1169 = vpack.c.b16 %v756, %v749
    %v1170 = vpack.c.b16 %v757, %v750
    %v1171 = vpack.c.b16 %v758, %v751
    %v1172 = vpack.c.b16 %v759, %v752
    %v1173 = vpack.c.b16 %v767, %v760
    %v1174 = vpack.c.b16 %v768, %v761
    %v1175 = vpack.c.b16 %v769, %v762
    %v1176 = vpack.c.b16 %v770, %v763
    %v1177 = vpack.c.b16 %v771, %v764
    %v1178 = vpack.c.b16 %v772, %v765
    %v1179 = vpack.c.b16 %v773, %v766
    %v1180 = vpack.c.b16 %v781, %v774
    %v1181 = vpack.c.b16 %v782, %v775
    %v1182 = vpack.c.b16 %v783, %v776
    %v1183 = vpack.c.b16 %v784, %v777
    %v1184 = vpack.c.b16 %v785, %v778
    %v1185 = vpack.c.b16 %v786, %v779
    %v1186 = vpack.c.b16 %v787, %v780
    %v1187 = vpack.c.b16 %v795, %v788
    %v1188 = vpack.c.b16 %v796, %v789
    %v1189 = vpack.c.b16 %v797, %v790
    %v1190 = vpack.c.b16 %v798, %v791
    %v1191 = vpack.c.b16 %v799, %v792
    %v1192 = vpack.c.b16 %v800, %v793
    %v1193 = vpack.c.b16 %v801, %v794
    %v1194 = vpack.c.b16 %v809, %v802
    %v1195 = vpack.c.b16 %v810, %v803
    %v1196 = vpack.c.b16 %v811, %v804
    %v1197 = vpack.c.b16 %v812, %v805
    %v1198 = vpack.c.b16 %v813, %v806
    %v1199 = vpack.c.b16 %v814, %v807
    %v1200 = vpack.c.b16 %v815, %v808
    %v1201 = vpack.c.b16 %v823, %v816
    %v1202 = vpack.c.b16 %v824, %v817
    %v1203 = vpack.c.b16 %v825, %v818
    %v1204 = vpack.c.b16 %v826, %v819
    %v1205 = vpack.c.b16 %v827, %v820
    %v1206 = vpack.c.b16 %v828, %v821
    %v1207 = vpack.c.b16 %v829, %v822
    %v1208 = vpack.c.b16 %v837, %v830
    %v1209 = vpack.c.b16 %v838, %v831
    %v1210 = vpack.c.b16 %v839, %v832
    %v1211 = vpack.c.b16 %v840, %v833
    %v1212 = vpack.c.b16 %v841, %v834
    %v1213 = vpack.c.b16 %v842, %v835
    %v1214 = vpack.c.b16 %v843, %v836
    %v1215 = vpack.c.b16 %v851, %v844
    %v1216 = vpack.c.b16 %v852, %v845
    %v1217 = vpack.c.b16 %v853, %v846
    %v1218 = vpack.c.b16 %v854, %v847
    %v1219 = vpack.c.b16 %v855, %v848
    %v1220 = vpack.c.b16 %v856, %v849
    %v1221 = vpack.c.b16 %v857, %v850
    %v1222 = vpack.c.b16 %v865, %v858
    %v1223 = vpack.c.b16 %v866, %v859
    %v1224 = vpack.c.b16 %v867, %v860
    %v1225 = vpack.c.b16 %v868, %v861
    %v1226 = vpack.c.b16 %v869, %v862
    %v1227 = vpack.c.b16 %v870, %v863
    %v1228 = vpack.c.b16 %v871, %v864
    %v1229 = vpack.c.b16 %v879, %v872
    %v1230 = vpack.c.b16 %v880, %v873
    %v1231 = vpack.c.b16 %v881, %v874
    %v1232 = vpack.c.b16 %v882, %v875
    %v1233 = vpack.c.b16 %v883, %v876
    %v1234 = vpack.c.b16 %v884, %v877
    %v1235 = vpack.c.b16 %v885, %v878
    %v1236 = vpack.c.b16 %v893, %v886
    %v1237 = vpack.c.b16 %v894, %v887
    %v1238 = vpack.c.b16 %v895, %v888
    %v1239 = vpack.c.b16 %v896, %v889
    %v1240 = vpack.c.b16 %v897, %v890
    %v1241 = vpack.c.b16 %v898, %v891
    %v1242 = vpack.c.b16 %v899, %v892
    %v1243 = vpack.c.b16 %v907, %v900
    %v1244 = vpack.c.b16 %v908, %v901
    %v1245 = vpack.c.b16 %v909, %v902
    %v1246 = vpack.c.b16 %v910, %v903
    %v1247 = vpack.c.b16 %v911, %v904
    %v1248 = vpack.c.b16 %v912, %v905
    %v1249 = vpack.c.b16 %v913, %v906
    %v1250 = vpack.c.b16 %v921, %v914
    %v1251 = vpack.c.b16 %v922, %v915
    %v1252 = vpack.c.b16 %v923, %v916
    %v1253 = vpack.c.b16 %v924, %v917
    %v1254 = vpack.c.b16 %v925, %v918
    %v1255 = vpack.c.b16 %v926, %v919
    %v1256 = vpack.c.b16 %v927, %v920
    %v1257 = vpack.c.b16 %v935, %v928
    %v1258 = vpack.c.b16 %v936, %v929
    %v1259 = vpack.c.b16 %v937, %v930
    %v1260 = vpack.c.b16 %v938, %v931
    %v1261 = vpack.c.b16 %v939, %v932
    %v1262 = vpack.c.b16 %v940, %v933
    %v1263 = vpack.c.b16 %v941, %v934
    %v1264 = vpack.c.b16 %v949, %v942
    %v1265 = vpack.c.b16 %v950, %v943
    %v1266 = vpack.c.b16 %v951, %v944
    %v1267 = vpack.c.b16 %v952, %v945
    %v1268 = vpack.c.b16 %v953, %v946
    %v1269 = vpack.c.b16 %v954, %v947
    %v1270 = vpack.c.b16 %v955, %v948
    %v1271 = vpack.c.b16 %v963, %v956
    %v1272 = vpack.c.b16 %v964, %v957
    %v1273 = vpack.c.b16 %v965, %v958
    %v1274 = vpack.c.b16 %v966, %v959
    %v1275 = vpack.c.b16 %v967, %v960
    %v1276 = vpack.c.b16 %v968, %v961
    %v1277 = vpack.c.b16 %v969, %v962
    %v1278 = vpack.c.b16 %v977, %v970
    %v1279 = vpack.c.b16 %v978, %v971
    %v1280 = vpack.c.b16 %v979, %v972
    %v1281 = vpack.c.b16 %v980, %v973
    %v1282 = vpack.c.b16 %v981, %v974
    %v1283 = vpack.c.b16 %v982, %v975
    %v1284 = vpack.c.b16 %v983, %v976
    %v1285 = vpack.c.b16 %v991, %v984
    %v1286 = vpack.c.b16 %v992, %v985
    %v1287 = vpack.c.b16 %v993, %v986
    %v1288 = vpack.c.b16 %v994, %v987
    %v1289 = vpack.c.b16 %v995, %v988
    %v1290 = vpack.c.b16 %v996, %v989
    %v1291 = vpack.c.b16 %v997, %v990
    %v1292 = vpack.c.b16 %v1005, %v998
    %v1293 = vpack.c.b16 %v1006, %v999
    %v1294 = vpack.c.b16 %v1007, %v1000
    %v1295 = vpack.c.b16 %v1008, %v1001
    %v1296 = vpack.c.b16 %v1009, %v1002
    %v1297 = vpack.c.b16 %v1010, %v1003
    %v1298 = vpack.c.b16 %v1011, %v1004
    %v1299 = vpack.c.b16 %v1019, %v1012
    %v1300 = vpack.c.b16 %v1020, %v1013
    %v1301 = vpack.c.b16 %v1021, %v1014
    %v1302 = vpack.c.b16 %v1022, %v1015
    %v1303 = vpack.c.b16 %v1023, %v1016
    %v1304 = vpack.c.b16 %v1024, %v1017
    %v1305 = vpack.c.b16 %v1025, %v1018
    %v1306 = vpack.c.b16 %v1033, %v1026
    %v1307 = vpack.c.b16 %v1034, %v1027
    %v1308 = vpack.c.b16 %v1035, %v1028
    %v1309 = vpack.c.b16 %v1036, %v1029
    %v1310 = vpack.c.b16 %v1037, %v1030
    %v1311 = vpack.c.b16 %v1038, %v1031
    %v1312 = vpack.c.b16 %v1039, %v1032
    %v1313 = vpack.c.b16 %v1047, %v1040
    %v1314 = vpack.c.b16 %v1048, %v1041
    %v1315 = vpack.c.b16 %v1049, %v1042
    %v1316 = vpack.c.b16 %v1050, %v1043
    %v1317 = vpack.c.b16 %v1051, %v1044
    %v1318 = vpack.c.b16 %v1052, %v1045
    %v1319 = vpack.c.b16 %v1053, %v1046
    %v1320 = vpack.c.b16 %v1061, %v1054
    %v1321 = vpack.c.b16 %v1062, %v1055
    %v1322 = vpack.c.b16 %v1063, %v1056
    %v1323 = vpack.c.b16 %v1064, %v1057
    %v1324 = vpack.c.b16 %v1065, %v1058
    %v1325 = vpack.c.b16 %v1066, %v1059
    %v1326 = vpack.c.b16 %v1067, %v1060
    %v1327 = vpack.c.b16 %v1075, %v1068
    %v1328 = vpack.c.b16 %v1076, %v1069
    %v1329 = vpack.c.b16 %v1077, %v1070
    %v1330 = vpack.c.b16 %v1078, %v1071
    %v1331 = vpack.c.b16 %v1079, %v1072
    %v1332 = vpack.c.b16 %v1080, %v1073
    %v1333 = vpack.c.b16 %v1081, %v1074
    %v1334 = vpack.c.b16 %v1089, %v1082
    %v1335 = vpack.c.b16 %v1090, %v1083
    %v1336 = vpack.c.b16 %v1091, %v1084
    %v1337 = vpack.c.b16 %v1092, %v1085
    %v1338 = vpack.c.b16 %v1093, %v1086
    %v1339 = vpack.c.b16 %v1094, %v1087
    %v1340 = vpack.c.b16 %v1095, %v1088
    %v1341 = vpack.c.b16 %v1103, %v1096
    %v1342 = vpack.c.b16 %v1104, %v1097
    %v1343 = vpack.c.b16 %v1105, %v1098
    %v1344 = vpack.c.b16 %v1106, %v1099
    %v1345 = vpack.c.b16 %v1107, %v1100
    %v1346 = vpack.c.b16 %v1108, %v1101
    %v1347 = vpack.c.b16 %v1109, %v1102
    %v1348 = vpack.c.b16 %v1117, %v1110
    %v1349 = vpack.c.b16 %v1118, %v1111
    %v1350 = vpack.c.b16 %v1119, %v1112
    %v1351 = vpack.c.b16 %v1120, %v1113
    %v1352 = vpack.c.b16 %v1121, %v1114
    %v1353 = vpack.c.b16 %v1122, %v1115
    %v1354 = vpack.c.b16 %v1123, %v1116
    %v1355 = vpack.c.b16 %v1131, %v1124
    %v1356 = vpack.c.b16 %v1132, %v1125
    %v1357 = vpack.c.b16 %v1133, %v1126
    %v1358 = vpack.c.b16 %v1134, %v1127
    %v1359 = vpack.c.b16 %v1135, %v1128
    %v1360 = vpack.c.b16 %v1136, %v1129
    %v1361 = vpack.c.b16 %v1137, %v1130
    %1586 = vmatpush.bf16.msra.mxu0 %v1187
    %1587 = vmatpush.bf16.msra.mxu0 %v1180
    %1588 = vmatpush.bf16.msra.mxu0 %v1173
    %1589 = vmatpush.bf16.msra.mxu0 %v1166
    %1590 = vmatpush.bf16.msra.mxu0 %v1159
    %1591 = vmatpush.bf16.msra.mxu0 %v1152
    %1592 = vmatpush.bf16.msra.mxu0 %v1145
    %1593 = vmatpush.bf16.msra.mxu0 %v1138
    %1594 = vmatmul.bf16.gmra.mxu0 %v426
    %v1595 = vpop.f32.mrf.mxu0
    %v1596 = vadd.f32 %v406, %v1595
    %v1597 = vpop.f32.mrf.mxu0
    %1598 = vdwg.mxu0
    %1599 = vmatpush.bf16.msra.mxu0 %v1243
    %1600 = vmatpush.bf16.msra.mxu0 %v1236
    %1601 = vmatpush.bf16.msra.mxu0 %v1229
    %1602 = vmatpush.bf16.msra.mxu0 %v1222
    %1603 = vmatpush.bf16.msra.mxu0 %v1215
    %1604 = vmatpush.bf16.msra.mxu0 %v1208
    %1605 = vmatpush.bf16.msra.mxu0 %v1201
    %1606 = vmatpush.bf16.msra.mxu0 %v1194
    %1607 = vmatmul.bf16.gmra.mxu0 %v427
    %v1608 = vpop.f32.mrf.mxu0
    %v1609 = vadd.f32 %v1596, %v1608
    %v1610 = vpop.f32.mrf.mxu0
    %1611 = vdwg.mxu0
    %1612 = vmatpush.bf16.msra.mxu0 %v1299
    %1613 = vmatpush.bf16.msra.mxu0 %v1292
    %1614 = vmatpush.bf16.msra.mxu0 %v1285
    %1615 = vmatpush.bf16.msra.mxu0 %v1278
    %1616 = vmatpush.bf16.msra.mxu0 %v1271
    %1617 = vmatpush.bf16.msra.mxu0 %v1264
    %1618 = vmatpush.bf16.msra.mxu0 %v1257
    %1619 = vmatpush.bf16.msra.mxu0 %v1250
    %1620 = vmatmul.bf16.gmra.mxu0 %v428
    %v1621 = vpop.f32.mrf.mxu0
    %v1622 = vadd.f32 %v1609, %v1621
    %v1623 = vpop.f32.mrf.mxu0
    %1624 = vdwg.mxu0
    %1625 = vmatpush.bf16.msra.mxu0 %v1355
    %1626 = vmatpush.bf16.msra.mxu0 %v1348
    %1627 = vmatpush.bf16.msra.mxu0 %v1341
    %1628 = vmatpush.bf16.msra.mxu0 %v1334
    %1629 = vmatpush.bf16.msra.mxu0 %v1327
    %1630 = vmatpush.bf16.msra.mxu0 %v1320
    %1631 = vmatpush.bf16.msra.mxu0 %v1313
    %1632 = vmatpush.bf16.msra.mxu0 %v1306
    %1633 = vmatmul.bf16.gmra.mxu0 %v429
    %v1634 = vpop.f32.mrf.mxu0
    %v1635 = vadd.f32 %v1622, %v1634
    %v1636 = vpop.f32.mrf.mxu0
    %1637 = vdwg.mxu0
    %1638 = vmatpush.bf16.msra.mxu0 %v1188
    %1639 = vmatpush.bf16.msra.mxu0 %v1181
    %1640 = vmatpush.bf16.msra.mxu0 %v1174
    %1641 = vmatpush.bf16.msra.mxu0 %v1167
    %1642 = vmatpush.bf16.msra.mxu0 %v1160
    %1643 = vmatpush.bf16.msra.mxu0 %v1153
    %1644 = vmatpush.bf16.msra.mxu0 %v1146
    %1645 = vmatpush.bf16.msra.mxu0 %v1139
    %1646 = vmatmul.bf16.gmra.mxu0 %v426
    %v1647 = vpop.f32.mrf.mxu0
    %v1648 = vadd.f32 %v407, %v1647
    %v1649 = vpop.f32.mrf.mxu0
    %1650 = vdwg.mxu0
    %1651 = vmatpush.bf16.msra.mxu0 %v1244
    %1652 = vmatpush.bf16.msra.mxu0 %v1237
    %1653 = vmatpush.bf16.msra.mxu0 %v1230
    %1654 = vmatpush.bf16.msra.mxu0 %v1223
    %1655 = vmatpush.bf16.msra.mxu0 %v1216
    %1656 = vmatpush.bf16.msra.mxu0 %v1209
    %1657 = vmatpush.bf16.msra.mxu0 %v1202
    %1658 = vmatpush.bf16.msra.mxu0 %v1195
    %1659 = vmatmul.bf16.gmra.mxu0 %v427
    %v1660 = vpop.f32.mrf.mxu0
    %v1661 = vadd.f32 %v1648, %v1660
    %v1662 = vpop.f32.mrf.mxu0
    %1663 = vdwg.mxu0
    %1664 = vmatpush.bf16.msra.mxu0 %v1300
    %1665 = vmatpush.bf16.msra.mxu0 %v1293
    %1666 = vmatpush.bf16.msra.mxu0 %v1286
    %1667 = vmatpush.bf16.msra.mxu0 %v1279
    %1668 = vmatpush.bf16.msra.mxu0 %v1272
    %1669 = vmatpush.bf16.msra.mxu0 %v1265
    %1670 = vmatpush.bf16.msra.mxu0 %v1258
    %1671 = vmatpush.bf16.msra.mxu0 %v1251
    %1672 = vmatmul.bf16.gmra.mxu0 %v428
    %v1673 = vpop.f32.mrf.mxu0
    %v1674 = vadd.f32 %v1661, %v1673
    %v1675 = vpop.f32.mrf.mxu0
    %1676 = vdwg.mxu0
    %1677 = vmatpush.bf16.msra.mxu0 %v1356
    %1678 = vmatpush.bf16.msra.mxu0 %v1349
    %1679 = vmatpush.bf16.msra.mxu0 %v1342
    %1680 = vmatpush.bf16.msra.mxu0 %v1335
    %1681 = vmatpush.bf16.msra.mxu0 %v1328
    %1682 = vmatpush.bf16.msra.mxu0 %v1321
    %1683 = vmatpush.bf16.msra.mxu0 %v1314
    %1684 = vmatpush.bf16.msra.mxu0 %v1307
    %1685 = vmatmul.bf16.gmra.mxu0 %v429
    %v1686 = vpop.f32.mrf.mxu0
    %v1687 = vadd.f32 %v1674, %v1686
    %v1688 = vpop.f32.mrf.mxu0
    %1689 = vdwg.mxu0
    %1690 = vmatpush.bf16.msra.mxu0 %v1189
    %1691 = vmatpush.bf16.msra.mxu0 %v1182
    %1692 = vmatpush.bf16.msra.mxu0 %v1175
    %1693 = vmatpush.bf16.msra.mxu0 %v1168
    %1694 = vmatpush.bf16.msra.mxu0 %v1161
    %1695 = vmatpush.bf16.msra.mxu0 %v1154
    %1696 = vmatpush.bf16.msra.mxu0 %v1147
    %1697 = vmatpush.bf16.msra.mxu0 %v1140
    %1698 = vmatmul.bf16.gmra.mxu0 %v426
    %v1699 = vpop.f32.mrf.mxu0
    %v1700 = vadd.f32 %v408, %v1699
    %v1701 = vpop.f32.mrf.mxu0
    %1702 = vdwg.mxu0
    %1703 = vmatpush.bf16.msra.mxu0 %v1245
    %1704 = vmatpush.bf16.msra.mxu0 %v1238
    %1705 = vmatpush.bf16.msra.mxu0 %v1231
    %1706 = vmatpush.bf16.msra.mxu0 %v1224
    %1707 = vmatpush.bf16.msra.mxu0 %v1217
    %1708 = vmatpush.bf16.msra.mxu0 %v1210
    %1709 = vmatpush.bf16.msra.mxu0 %v1203
    %1710 = vmatpush.bf16.msra.mxu0 %v1196
    %1711 = vmatmul.bf16.gmra.mxu0 %v427
    %v1712 = vpop.f32.mrf.mxu0
    %v1713 = vadd.f32 %v1700, %v1712
    %v1714 = vpop.f32.mrf.mxu0
    %1715 = vdwg.mxu0
    %1716 = vmatpush.bf16.msra.mxu0 %v1301
    %1717 = vmatpush.bf16.msra.mxu0 %v1294
    %1718 = vmatpush.bf16.msra.mxu0 %v1287
    %1719 = vmatpush.bf16.msra.mxu0 %v1280
    %1720 = vmatpush.bf16.msra.mxu0 %v1273
    %1721 = vmatpush.bf16.msra.mxu0 %v1266
    %1722 = vmatpush.bf16.msra.mxu0 %v1259
    %1723 = vmatpush.bf16.msra.mxu0 %v1252
    %1724 = vmatmul.bf16.gmra.mxu0 %v428
    %v1725 = vpop.f32.mrf.mxu0
    %v1726 = vadd.f32 %v1713, %v1725
    %v1727 = vpop.f32.mrf.mxu0
    %1728 = vdwg.mxu0
    %1729 = vmatpush.bf16.msra.mxu0 %v1357
    %1730 = vmatpush.bf16.msra.mxu0 %v1350
    %1731 = vmatpush.bf16.msra.mxu0 %v1343
    %1732 = vmatpush.bf16.msra.mxu0 %v1336
    %1733 = vmatpush.bf16.msra.mxu0 %v1329
    %1734 = vmatpush.bf16.msra.mxu0 %v1322
    %1735 = vmatpush.bf16.msra.mxu0 %v1315
    %1736 = vmatpush.bf16.msra.mxu0 %v1308
    %1737 = vmatmul.bf16.gmra.mxu0 %v429
    %v1738 = vpop.f32.mrf.mxu0
    %v1739 = vadd.f32 %v1726, %v1738
    %v1740 = vpop.f32.mrf.mxu0
    %1741 = vdwg.mxu0
    %1742 = vmatpush.bf16.msra.mxu0 %v1190
    %1743 = vmatpush.bf16.msra.mxu0 %v1183
    %1744 = vmatpush.bf16.msra.mxu0 %v1176
    %1745 = vmatpush.bf16.msra.mxu0 %v1169
    %1746 = vmatpush.bf16.msra.mxu0 %v1162
    %1747 = vmatpush.bf16.msra.mxu0 %v1155
    %1748 = vmatpush.bf16.msra.mxu0 %v1148
    %1749 = vmatpush.bf16.msra.mxu0 %v1141
    %1750 = vmatmul.bf16.gmra.mxu0 %v426
    %v1751 = vpop.f32.mrf.mxu0
    %v1752 = vadd.f32 %v409, %v1751
    %v1753 = vpop.f32.mrf.mxu0
    %1754 = vdwg.mxu0
    %1755 = vmatpush.bf16.msra.mxu0 %v1246
    %1756 = vmatpush.bf16.msra.mxu0 %v1239
    %1757 = vmatpush.bf16.msra.mxu0 %v1232
    %1758 = vmatpush.bf16.msra.mxu0 %v1225
    %1759 = vmatpush.bf16.msra.mxu0 %v1218
    %1760 = vmatpush.bf16.msra.mxu0 %v1211
    %1761 = vmatpush.bf16.msra.mxu0 %v1204
    %1762 = vmatpush.bf16.msra.mxu0 %v1197
    %1763 = vmatmul.bf16.gmra.mxu0 %v427
    %v1764 = vpop.f32.mrf.mxu0
    %v1765 = vadd.f32 %v1752, %v1764
    %v1766 = vpop.f32.mrf.mxu0
    %1767 = vdwg.mxu0
    %1768 = vmatpush.bf16.msra.mxu0 %v1302
    %1769 = vmatpush.bf16.msra.mxu0 %v1295
    %1770 = vmatpush.bf16.msra.mxu0 %v1288
    %1771 = vmatpush.bf16.msra.mxu0 %v1281
    %1772 = vmatpush.bf16.msra.mxu0 %v1274
    %1773 = vmatpush.bf16.msra.mxu0 %v1267
    %1774 = vmatpush.bf16.msra.mxu0 %v1260
    %1775 = vmatpush.bf16.msra.mxu0 %v1253
    %1776 = vmatmul.bf16.gmra.mxu0 %v428
    %v1777 = vpop.f32.mrf.mxu0
    %v1778 = vadd.f32 %v1765, %v1777
    %v1779 = vpop.f32.mrf.mxu0
    %1780 = vdwg.mxu0
    %1781 = vmatpush.bf16.msra.mxu0 %v1358
    %1782 = vmatpush.bf16.msra.mxu0 %v1351
    %1783 = vmatpush.bf16.msra.mxu0 %v1344
    %1784 = vmatpush.bf16.msra.mxu0 %v1337
    %1785 = vmatpush.bf16.msra.mxu0 %v1330
    %1786 = vmatpush.bf16.msra.mxu0 %v1323
    %1787 = vmatpush.bf16.msra.mxu0 %v1316
    %1788 = vmatpush.bf16.msra.mxu0 %v1309
    %1789 = vmatmul.bf16.gmra.mxu0 %v429
    %v1790 = vpop.f32.mrf.mxu0
    %v1791 = vadd.f32 %v1778, %v1790
    %v1792 = vpop.f32.mrf.mxu0
    %1793 = vdwg.mxu0
    %1794 = vmatpush.bf16.msra.mxu0 %v1191
    %1795 = vmatpush.bf16.msra.mxu0 %v1184
    %1796 = vmatpush.bf16.msra.mxu0 %v1177
    %1797 = vmatpush.bf16.msra.mxu0 %v1170
    %1798 = vmatpush.bf16.msra.mxu0 %v1163
    %1799 = vmatpush.bf16.msra.mxu0 %v1156
    %1800 = vmatpush.bf16.msra.mxu0 %v1149
    %1801 = vmatpush.bf16.msra.mxu0 %v1142
    %1802 = vmatmul.bf16.gmra.mxu0 %v426
    %v1803 = vpop.f32.mrf.mxu0
    %v1804 = vadd.f32 %v410, %v1803
    %v1805 = vpop.f32.mrf.mxu0
    %1806 = vdwg.mxu0
    %1807 = vmatpush.bf16.msra.mxu0 %v1247
    %1808 = vmatpush.bf16.msra.mxu0 %v1240
    %1809 = vmatpush.bf16.msra.mxu0 %v1233
    %1810 = vmatpush.bf16.msra.mxu0 %v1226
    %1811 = vmatpush.bf16.msra.mxu0 %v1219
    %1812 = vmatpush.bf16.msra.mxu0 %v1212
    %1813 = vmatpush.bf16.msra.mxu0 %v1205
    %1814 = vmatpush.bf16.msra.mxu0 %v1198
    %1815 = vmatmul.bf16.gmra.mxu0 %v427
    %v1816 = vpop.f32.mrf.mxu0
    %v1817 = vadd.f32 %v1804, %v1816
    %v1818 = vpop.f32.mrf.mxu0
    %1819 = vdwg.mxu0
    %1820 = vmatpush.bf16.msra.mxu0 %v1303
    %1821 = vmatpush.bf16.msra.mxu0 %v1296
    %1822 = vmatpush.bf16.msra.mxu0 %v1289
    %1823 = vmatpush.bf16.msra.mxu0 %v1282
    %1824 = vmatpush.bf16.msra.mxu0 %v1275
    %1825 = vmatpush.bf16.msra.mxu0 %v1268
    %1826 = vmatpush.bf16.msra.mxu0 %v1261
    %1827 = vmatpush.bf16.msra.mxu0 %v1254
    %1828 = vmatmul.bf16.gmra.mxu0 %v428
    %v1829 = vpop.f32.mrf.mxu0
    %v1830 = vadd.f32 %v1817, %v1829
    %v1831 = vpop.f32.mrf.mxu0
    %1832 = vdwg.mxu0
    %1833 = vmatpush.bf16.msra.mxu0 %v1359
    %1834 = vmatpush.bf16.msra.mxu0 %v1352
    %1835 = vmatpush.bf16.msra.mxu0 %v1345
    %1836 = vmatpush.bf16.msra.mxu0 %v1338
    %1837 = vmatpush.bf16.msra.mxu0 %v1331
    %1838 = vmatpush.bf16.msra.mxu0 %v1324
    %1839 = vmatpush.bf16.msra.mxu0 %v1317
    %1840 = vmatpush.bf16.msra.mxu0 %v1310
    %1841 = vmatmul.bf16.gmra.mxu0 %v429
    %v1842 = vpop.f32.mrf.mxu0
    %v1843 = vadd.f32 %v1830, %v1842
    %v1844 = vpop.f32.mrf.mxu0
    %1845 = vdwg.mxu0
    %1846 = vmatpush.bf16.msra.mxu0 %v1192
    %1847 = vmatpush.bf16.msra.mxu0 %v1185
    %1848 = vmatpush.bf16.msra.mxu0 %v1178
    %1849 = vmatpush.bf16.msra.mxu0 %v1171
    %1850 = vmatpush.bf16.msra.mxu0 %v1164
    %1851 = vmatpush.bf16.msra.mxu0 %v1157
    %1852 = vmatpush.bf16.msra.mxu0 %v1150
    %1853 = vmatpush.bf16.msra.mxu0 %v1143
    %1854 = vmatmul.bf16.gmra.mxu0 %v426
    %v1855 = vpop.f32.mrf.mxu0
    %v1856 = vadd.f32 %v411, %v1855
    %v1857 = vpop.f32.mrf.mxu0
    %1858 = vdwg.mxu0
    %1859 = vmatpush.bf16.msra.mxu0 %v1248
    %1860 = vmatpush.bf16.msra.mxu0 %v1241
    %1861 = vmatpush.bf16.msra.mxu0 %v1234
    %1862 = vmatpush.bf16.msra.mxu0 %v1227
    %1863 = vmatpush.bf16.msra.mxu0 %v1220
    %1864 = vmatpush.bf16.msra.mxu0 %v1213
    %1865 = vmatpush.bf16.msra.mxu0 %v1206
    %1866 = vmatpush.bf16.msra.mxu0 %v1199
    %1867 = vmatmul.bf16.gmra.mxu0 %v427
    %v1868 = vpop.f32.mrf.mxu0
    %v1869 = vadd.f32 %v1856, %v1868
    %v1870 = vpop.f32.mrf.mxu0
    %1871 = vdwg.mxu0
    %1872 = vmatpush.bf16.msra.mxu0 %v1304
    %1873 = vmatpush.bf16.msra.mxu0 %v1297
    %1874 = vmatpush.bf16.msra.mxu0 %v1290
    %1875 = vmatpush.bf16.msra.mxu0 %v1283
    %1876 = vmatpush.bf16.msra.mxu0 %v1276
    %1877 = vmatpush.bf16.msra.mxu0 %v1269
    %1878 = vmatpush.bf16.msra.mxu0 %v1262
    %1879 = vmatpush.bf16.msra.mxu0 %v1255
    %1880 = vmatmul.bf16.gmra.mxu0 %v428
    %v1881 = vpop.f32.mrf.mxu0
    %v1882 = vadd.f32 %v1869, %v1881
    %v1883 = vpop.f32.mrf.mxu0
    %1884 = vdwg.mxu0
    %1885 = vmatpush.bf16.msra.mxu0 %v1360
    %1886 = vmatpush.bf16.msra.mxu0 %v1353
    %1887 = vmatpush.bf16.msra.mxu0 %v1346
    %1888 = vmatpush.bf16.msra.mxu0 %v1339
    %1889 = vmatpush.bf16.msra.mxu0 %v1332
    %1890 = vmatpush.bf16.msra.mxu0 %v1325
    %1891 = vmatpush.bf16.msra.mxu0 %v1318
    %1892 = vmatpush.bf16.msra.mxu0 %v1311
    %1893 = vmatmul.bf16.gmra.mxu0 %v429
    %v1894 = vpop.f32.mrf.mxu0
    %v1895 = vadd.f32 %v1882, %v1894
    %v1896 = vpop.f32.mrf.mxu0
    %1897 = vdwg.mxu0
    %1898 = vmatpush.bf16.msra.mxu0 %v1193
    %1899 = vmatpush.bf16.msra.mxu0 %v1186
    %1900 = vmatpush.bf16.msra.mxu0 %v1179
    %1901 = vmatpush.bf16.msra.mxu0 %v1172
    %1902 = vmatpush.bf16.msra.mxu0 %v1165
    %1903 = vmatpush.bf16.msra.mxu0 %v1158
    %1904 = vmatpush.bf16.msra.mxu0 %v1151
    %1905 = vmatpush.bf16.msra.mxu0 %v1144
    %1906 = vmatmul.bf16.gmra.mxu0 %v426
    %v1907 = vpop.f32.mrf.mxu0
    %v1908 = vadd.f32 %v412, %v1907
    %v1909 = vpop.f32.mrf.mxu0
    %1910 = vdwg.mxu0
    %1911 = vmatpush.bf16.msra.mxu0 %v1249
    %1912 = vmatpush.bf16.msra.mxu0 %v1242
    %1913 = vmatpush.bf16.msra.mxu0 %v1235
    %1914 = vmatpush.bf16.msra.mxu0 %v1228
    %1915 = vmatpush.bf16.msra.mxu0 %v1221
    %1916 = vmatpush.bf16.msra.mxu0 %v1214
    %1917 = vmatpush.bf16.msra.mxu0 %v1207
    %1918 = vmatpush.bf16.msra.mxu0 %v1200
    %1919 = vmatmul.bf16.gmra.mxu0 %v427
    %v1920 = vpop.f32.mrf.mxu0
    %v1921 = vadd.f32 %v1908, %v1920
    %v1922 = vpop.f32.mrf.mxu0
    %1923 = vdwg.mxu0
    %1924 = vmatpush.bf16.msra.mxu0 %v1305
    %1925 = vmatpush.bf16.msra.mxu0 %v1298
    %1926 = vmatpush.bf16.msra.mxu0 %v1291
    %1927 = vmatpush.bf16.msra.mxu0 %v1284
    %1928 = vmatpush.bf16.msra.mxu0 %v1277
    %1929 = vmatpush.bf16.msra.mxu0 %v1270
    %1930 = vmatpush.bf16.msra.mxu0 %v1263
    %1931 = vmatpush.bf16.msra.mxu0 %v1256
    %1932 = vmatmul.bf16.gmra.mxu0 %v428
    %v1933 = vpop.f32.mrf.mxu0
    %v1934 = vadd.f32 %v1921, %v1933
    %v1935 = vpop.f32.mrf.mxu0
    %1936 = vdwg.mxu0
    %1937 = vmatpush.bf16.msra.mxu0 %v1361
    %1938 = vmatpush.bf16.msra.mxu0 %v1354
    %1939 = vmatpush.bf16.msra.mxu0 %v1347
    %1940 = vmatpush.bf16.msra.mxu0 %v1340
    %1941 = vmatpush.bf16.msra.mxu0 %v1333
    %1942 = vmatpush.bf16.msra.mxu0 %v1326
    %1943 = vmatpush.bf16.msra.mxu0 %v1319
    %1944 = vmatpush.bf16.msra.mxu0 %v1312
    %1945 = vmatmul.bf16.gmra.mxu0 %v429
    %v1946 = vpop.f32.mrf.mxu0
    %v1947 = vadd.f32 %v1934, %v1946
    %v1948 = vpop.f32.mrf.mxu0
    %1949 = vdwg.mxu0
    %v1950 = vsub.f32 0.0, %v1635
    %v1951 = vsub.f32 0.0, %v1687
    %v1952 = vsub.f32 0.0, %v1739
    %v1953 = vsub.f32 0.0, %v1791
    %v1954 = vsub.f32 0.0, %v1843
    %v1955 = vsub.f32 0.0, %v1895
    %v1956 = vsub.f32 0.0, %v1947
    %v1957 = vmul.f32 %v1950, 1.442695
    %v1958 = vpow.pop %v1957
    %v1959 = vmul.f32 %v1951, 1.442695
    %v1960 = vpow.pop %v1959
    %v1961 = vmul.f32 %v1952, 1.442695
    %v1962 = vpow.pop %v1961
    %v1963 = vmul.f32 %v1953, 1.442695
    %v1964 = vpow.pop %v1963
    %v1965 = vmul.f32 %v1954, 1.442695
    %v1966 = vpow.pop %v1965
    %v1967 = vmul.f32 %v1955, 1.442695
    %v1968 = vpow.pop %v1967
    %v1969 = vmul.f32 %v1956, 1.442695
    %v1970 = vpow.pop %v1969
    %v1971 = vadd.f32 %v1958, 1.0
    %v1972 = vadd.f32 %v1960, 1.0
    %v1973 = vadd.f32 %v1962, 1.0
    %v1974 = vadd.f32 %v1964, 1.0
    %v1975 = vadd.f32 %v1966, 1.0
    %v1976 = vadd.f32 %v1968, 1.0
    %v1977 = vadd.f32 %v1970, 1.0
    %v1978 = vrcp.pop %v1971
    %v1979 = vrcp.pop %v1972
    %v1980 = vrcp.pop %v1973
    %v1981 = vrcp.pop %v1974
    %v1982 = vrcp.pop %v1975
    %v1983 = vrcp.pop %v1976
    %v1984 = vrcp.pop %v1977
    %1985 = vst [vmem:[#allocation3] sm:$0xff] %v1978
    %1986 = vst [vmem:[#allocation3 + $0x8] sm:$0xff] %v1979
    %1987 = vst [vmem:[#allocation3 + $0x10] sm:$0xff] %v1980
    %1988 = vst [vmem:[#allocation3 + $0x18] sm:$0xff] %v1981
    %1989 = vst [vmem:[#allocation3 + $0x20] sm:$0xff] %v1982
    %1990 = vst [vmem:[#allocation3 + $0x28] sm:$0xff] %v1983
    %vm1991 = vcmask 130048
    %1992 = vst.msk [vmem:[#allocation3 + $0x30] sm:$0xff] %vm1991, %v1984
    // Predicated region
    $region22: #{tpu_custom_call.1} parent=1 // pred_check
      _
    $region23: #{tpu_custom_call.1} parent=1 // pred_check_branch
      %1994 = sbr.rel (0) target = $region25
    $region24: #{tpu_custom_call.1} parent=1 // pred_region
      %1996 = vsyncadd [#allocation4], 0
      %s1998 = sshll.u32 [#allocation3], 4
      %s1999 = int_to_ptr.vmem [resolvable:$true] %s1998
      %s2000 = sshll.u32 %s5, 4
      %s2001 = int_to_ptr.hbm [resolvable:$true] %s2000
      %2003 = dma.vmem_to_hbm [thread:$0]  %s1999, 896, %s2001, [#allocation4]
    $region25: #{tpu_custom_call.1} parent=1 // pred_fallthru
      _
    // Predicated region
    $region26: #{tpu_custom_call.1} parent=1 // pred_check
      _
    $region27: #{tpu_custom_call.1} parent=1 // pred_check_branch
      %2005 = sbr.rel (0) target = $region29
    $region28: #{tpu_custom_call.1} parent=1 // pred_region
      %2007 = dma.done [#allocation4], 896
    $region29: #{tpu_custom_call.1} parent=1 // pred_fallthru
      _
    %2008 = vsyncpa [#allocation4], 1

</llo_original>
